<compile_context>
chip_gen: v6e
topology: v6e:2x2x1
jax: 0.10.0
libtpu: 0.0.40
codegen_flags: <defaults>
</compile_context>

<pallas_src>
import jax
import jax.numpy as jnp
from jax import lax
from jax.experimental import pallas as pl
from jax.experimental.pallas import tpu as pltpu


def _make_dwconv_kernel(maps):
    """Fused depthwise-3x3 ('SAME', stride 1) over the concatenated token maps.

    maps: tuple of (token_offset, Hs, Ws); together they cover tokens [0, N).
    """

    def kernel(x_ref, w_ref, b_ref, o_ref):
        # x_ref / o_ref: (1, N, cb);  w_ref: (3, 3, cb) f32;  b_ref: (1, cb) f32.
        cb = o_ref.shape[-1]
        f32 = jnp.float32

        # 9 per-channel taps + bias: loaded once, kept as (cb,) lane vectors
        # (sublane-replicated at use).
        wv = [[w_ref[i, j, :] for j in range(3)] for i in range(3)]
        bias = b_ref[0, :]

        for (base, Hs, Ws) in maps:
            # Row starts are guaranteed 8-aligned iff both base and Ws are.
            align8 = (base % 8 == 0) and (Ws % 8 == 0)

            # Left/right image-edge masks for the rolled column taps
            # (hoisted out of the row loop; one pair per map).
            col = lax.broadcasted_iota(jnp.int32, (Ws, cb), 0)
            has_left = col > 0            # column w-1 is inside the image
            has_right = col < (Ws - 1)    # column w+1 is inside the image

            def _ds_row(r):
                start = base + r * Ws
                if align8 and not isinstance(start, int):
                    start = pl.multiple_of(start, 8)
                return pl.ds(start, Ws)

            def load_row(r):
                return x_ref[0, _ds_row(r), :]

            def store_row(r, acc):
                o_ref[0, _ds_row(r), :] = (acc + bias).astype(o_ref.dtype)

            def accum(acc, r, wrow):
                """acc += column taps of weight-row `wrow` applied to input row r.

                One aligned load per input row; the +/-1 column shifts are XLU
                rolls of that row with only the wrapped element masked to zero
                (the 'SAME' zero padding at the left/right image edge)."""
                row = load_row(r).astype(f32)
                term = row * wv[wrow][1]
                acc = term if acc is None else acc + term
                if Ws > 1:
                    left = pltpu.roll(row, shift=1, axis=0)        # x[.., w-1]
                    acc = acc + jnp.where(has_left, left, 0.0) * wv[wrow][0]
                    right = pltpu.roll(row, shift=Ws - 1, axis=0)  # x[.., w+1]
                    acc = acc + jnp.where(has_right, right, 0.0) * wv[wrow][2]
                return acc

            # --- first output row of the map (top edge: zero halo above) ----
            acc0 = accum(None, 0, 1)
            if Hs > 1:
                acc0 = accum(acc0, 1, 2)
            store_row(0, acc0)

            # --- interior rows: 3-row stencil inside a fori_loop ------------
            if Hs > 2:

                def interior(r, carry):
                    acc = accum(None, r - 1, 0)
                    acc = accum(acc, r, 1)
                    acc = accum(acc, r + 1, 2)
                    store_row(r, acc)
                    return carry

                lax.fori_loop(1, Hs - 1, interior, 0)

            # --- last output row (bottom edge: zero halo below) -------------
            if Hs > 1:
                accL = accum(None, Hs - 2, 0)
                accL = accum(accL, Hs - 1, 1)
                store_row(Hs - 1, accL)

    return kernel


def _vmem_capacity_bytes():
    try:
        return int(pltpu.get_tpu_info().vmem_capacity_bytes)
    except Exception:
        return 64 * 1024 * 1024   # v7x has the smallest VMEM of the targets


def _pick_c_block(C, N, itemsize, per_block_budget):
    """Largest lane-dense channel block whose (1, N, cb) tile fits the budget."""
    if N * C * itemsize <= per_block_budget:
        return C
    cands = [c for c in (512, 384, 256, 128) if C % c == 0]
    for c in cands:
        if N * c * itemsize <= per_block_budget:
            return c
    # Nothing fits the soft budget: take the smallest lane-dense block and rely
    # on the raised vmem limit below.
    return cands[-1] if cands else C


def dwconv_forward(x, H, W, w_hwc, bias, *, c_block=None):
    """Pallas equivalent of DWConv.forward.  x: (B, N, C), N = 21 * (H*W // 4).

    w_hwc: (3, 3, C) per-channel taps (PyTorch (C, 1, 3, 3) weight, transposed);
    bias: (C,).  Output: (B, N, C), same dtype as x.
    """
    B, N, C = x.shape
    assert H % 2 == 0 and W % 2 == 0, (H, W)
    n = (H * W) // 4
    assert N == 21 * n, (N, H, W)
    maps = ((0, 2 * H, 2 * W), (16 * n, H, W), (20 * n, H // 2, W // 2))

    itemsize = x.dtype.itemsize
    vmem_phys = _vmem_capacity_bytes()
    if c_block is None:
        c_block = _pick_c_block(C, N, itemsize, per_block_budget=vmem_phys // 8)
    assert C % c_block == 0, (C, c_block)
    num_cblk = C // c_block

    w_f32 = jnp.asarray(w_hwc, jnp.float32)
    b_f32 = jnp.asarray(bias, jnp.float32).reshape(1, C)

    # Double-buffered in + out blocks plus the (tiny) weight / bias blocks.
    block_bytes = N * c_block * itemsize
    est = 4 * block_bytes + 2 * (9 * c_block * 4 + c_block * 4)

    cp = dict(dimension_semantics=("parallel", "parallel"))
    if est > 10 * 1024 * 1024:   # could exceed v5e's 16 MiB default scoped VMEM
        cap = max(vmem_phys - (4 << 20), 32 << 20)
        cp["vmem_limit_bytes"] = int(
            min(max(int(est * 1.3) + (4 << 20), 32 << 20), cap))

    return pl.pallas_call(
        _make_dwconv_kernel(maps),
        out_shape=jax.ShapeDtypeStruct((B, N, C), x.dtype),
        grid=(B, num_cblk),
        in_specs=[
            pl.BlockSpec((1, N, c_block), lambda b, c: (b, 0, c)),
            pl.BlockSpec((3, 3, c_block), lambda b, c: (0, 0, c)),
            pl.BlockSpec((1, c_block), lambda b, c: (0, c)),
        ],
        out_specs=pl.BlockSpec((1, N, c_block), lambda b, c: (b, 0, c)),
        compiler_params=pltpu.CompilerParams(**cp),
    )(x, w_f32, b_f32)


# ----------------------------- pure-JAX reference -----------------------------

def _ref_dw(x_nhwc, w_hwc, bias):
    C = x_nhwc.shape[-1]
    out = lax.conv_general_dilated(
        x_nhwc, w_hwc[:, :, None, :], (1, 1), "SAME",
        dimension_numbers=("NHWC", "HWIO", "NHWC"),
        feature_group_count=C)
    return out + bias


def _ref_forward(x, H, W, w_hwc, bias):
    x = x.astype(jnp.float32)
    w_hwc = w_hwc.astype(jnp.float32)
    bias = bias.astype(jnp.float32)
    B, N, C = x.shape
    n = N // 21
    x1 = x[:, 0:16 * n, :].reshape(B, 2 * H, 2 * W, C)
    x2 = x[:, 16 * n:20 * n, :].reshape(B, H, W, C)
    x3 = x[:, 20 * n:, :].reshape(B, H // 2, W // 2, C)
    y1 = _ref_dw(x1, w_hwc, bias).reshape(B, 16 * n, C)
    y2 = _ref_dw(x2, w_hwc, bias).reshape(B, 4 * n, C)
    y3 = _ref_dw(x3, w_hwc, bias).reshape(B, n, C)
    return jnp.concatenate([y1, y2, y3], axis=1)


if __name__ == "__main__":
    # Small test shapes: base spatial H = W = 8 -> n = 16, N = 336 tokens.
    # C = 128 keeps the channel (lane) axis dense, as in production (dim = 768).
    B, C, H, W = 2, 128, 8, 8
    n = (H * W) // 4
    N = 21 * n

    key = jax.random.PRNGKey(0)
    kx, kw, kb = jax.random.split(key, 3)
    x = jax.random.normal(kx, (B, N, C), dtype=jnp.float32)
    # PyTorch Conv2d(dim, dim, 3, groups=dim).weight has shape (C, 1, 3, 3).
    w_pt = jax.random.normal(kw, (C, 1, 3, 3), dtype=jnp.float32) * 0.1
    bias = jax.random.normal(kb, (C,), dtype=jnp.float32) * 0.1
    w_hwc = jnp.transpose(w_pt[:, 0], (1, 2, 0))  # (3, 3, C)

    out = jax.block_until_ready(dwconv_forward(x, H, W, w_hwc, bias))
    ref = jax.block_until_ready(_ref_forward(x, H, W, w_hwc, bias))
    assert out.shape == (B, N, C), out.shape
    err = float(jnp.max(jnp.abs(out - ref)))
    assert err < 1e-4, err

    # Channel-blocked grid path (as used at production C = 768): C=256, cb=128.
    C2 = 256
    k1, k2, k3 = jax.random.split(jax.random.PRNGKey(1), 3)
    x2 = jax.random.normal(k1, (1, N, C2), dtype=jnp.float32)
    w2 = jax.random.normal(k2, (3, 3, C2), dtype=jnp.float32) * 0.1
    b2 = jax.random.normal(k3, (C2,), dtype=jnp.float32) * 0.1
    out2 = jax.block_until_ready(dwconv_forward(x2, H, W, w2, b2, c_block=128))
    ref2 = jax.block_until_ready(_ref_forward(x2, H, W, w2, b2))
    err2 = float(jnp.max(jnp.abs(out2 - ref2)))
    assert err2 < 1e-4, err2

    # bf16 I/O path (production activations): native-dtype blocks, f32 accumulate.
    x3 = x[:1].astype(jnp.bfloat16)
    out3 = jax.block_until_ready(dwconv_forward(x3, H, W, w_hwc, bias))
    ref3 = _ref_forward(x3, H, W, w_hwc, bias).astype(jnp.bfloat16)
    err3 = float(jnp.max(jnp.abs(out3.astype(jnp.float32) - ref3.astype(jnp.float32))))
    assert err3 < 0.1, err3

    print("KERNEL_OK")
</pallas_src>

<mosaic_0001>
module attributes {stable_mosaic.version = 11 : i64} {
  func.func @kernel(%arg0: i32, %arg1: i32, %arg2: memref<1x336x128xf32, #tpu.memory_space<vmem>>, %arg3: memref<3x3x128xf32, #tpu.memory_space<vmem>>, %arg4: memref<1x128xf32, #tpu.memory_space<vmem>>, %arg5: memref<1x336x128xf32, #tpu.memory_space<vmem>>) attributes {dimension_semantics = [#tpu.dimension_semantics<parallel>, #tpu.dimension_semantics<parallel>], iteration_bounds = array<i64: 2, 1>, scalar_prefetch = 0 : i64, scratch_operands = 0 : i64, tpu.core_type = #tpu.core_type<tc>, window_params = [{transform_indices = @transform_0, window_bounds = array<i64: 1, 336, 128>}, {transform_indices = @transform_1, window_bounds = array<i64: 3, 3, 128>}, {transform_indices = @transform_2, window_bounds = array<i64: 1, 128>}, {transform_indices = @transform_3, window_bounds = array<i64: 1, 336, 128>}]} {
    %c0 = arith.constant 0 : index
    %c0_0 = arith.constant 0 : index
    %c0_1 = arith.constant 0 : index
    %0 = vector.load %arg3[%c0, %c0_0, %c0_1] : memref<3x3x128xf32, #tpu.memory_space<vmem>>, vector<1x1x128xf32>
    %1 = vector.shape_cast %0 : vector<1x1x128xf32> to vector<128xf32>
    %c0_2 = arith.constant 0 : index
    %c1 = arith.constant 1 : index
    %c0_3 = arith.constant 0 : index
    %2 = vector.load %arg3[%c0_2, %c1, %c0_3] : memref<3x3x128xf32, #tpu.memory_space<vmem>>, vector<1x1x128xf32>
    %3 = vector.shape_cast %2 : vector<1x1x128xf32> to vector<128xf32>
    %c0_4 = arith.constant 0 : index
    %c2 = arith.constant 2 : index
    %c0_5 = arith.constant 0 : index
    %4 = vector.load %arg3[%c0_4, %c2, %c0_5] : memref<3x3x128xf32, #tpu.memory_space<vmem>>, vector<1x1x128xf32>
    %5 = vector.shape_cast %4 : vector<1x1x128xf32> to vector<128xf32>
    %c1_6 = arith.constant 1 : index
    %c0_7 = arith.constant 0 : index
    %c0_8 = arith.constant 0 : index
    %6 = vector.load %arg3[%c1_6, %c0_7, %c0_8] : memref<3x3x128xf32, #tpu.memory_space<vmem>>, vector<1x1x128xf32>
    %7 = vector.shape_cast %6 : vector<1x1x128xf32> to vector<128xf32>
    %c1_9 = arith.constant 1 : index
    %c1_10 = arith.constant 1 : index
    %c0_11 = arith.constant 0 : index
    %8 = vector.load %arg3[%c1_9, %c1_10, %c0_11] : memref<3x3x128xf32, #tpu.memory_space<vmem>>, vector<1x1x128xf32>
    %9 = vector.shape_cast %8 : vector<1x1x128xf32> to vector<128xf32>
    %c1_12 = arith.constant 1 : index
    %c2_13 = arith.constant 2 : index
    %c0_14 = arith.constant 0 : index
    %10 = vector.load %arg3[%c1_12, %c2_13, %c0_14] : memref<3x3x128xf32, #tpu.memory_space<vmem>>, vector<1x1x128xf32>
    %11 = vector.shape_cast %10 : vector<1x1x128xf32> to vector<128xf32>
    %c2_15 = arith.constant 2 : index
    %c0_16 = arith.constant 0 : index
    %c0_17 = arith.constant 0 : index
    %12 = vector.load %arg3[%c2_15, %c0_16, %c0_17] : memref<3x3x128xf32, #tpu.memory_space<vmem>>, vector<1x1x128xf32>
    %13 = vector.shape_cast %12 : vector<1x1x128xf32> to vector<128xf32>
    %c2_18 = arith.constant 2 : index
    %c1_19 = arith.constant 1 : index
    %c0_20 = arith.constant 0 : index
    %14 = vector.load %arg3[%c2_18, %c1_19, %c0_20] : memref<3x3x128xf32, #tpu.memory_space<vmem>>, vector<1x1x128xf32>
    %15 = vector.shape_cast %14 : vector<1x1x128xf32> to vector<128xf32>
    %c2_21 = arith.constant 2 : index
    %c2_22 = arith.constant 2 : index
    %c0_23 = arith.constant 0 : index
    %16 = vector.load %arg3[%c2_21, %c2_22, %c0_23] : memref<3x3x128xf32, #tpu.memory_space<vmem>>, vector<1x1x128xf32>
    %17 = vector.shape_cast %16 : vector<1x1x128xf32> to vector<128xf32>
    %c0_24 = arith.constant 0 : index
    %c0_25 = arith.constant 0 : index
    %18 = vector.load %arg4[%c0_24, %c0_25] : memref<1x128xf32, #tpu.memory_space<vmem>>, vector<1x128xf32>
    %19 = vector.shape_cast %18 : vector<1x128xf32> to vector<128xf32>
    %20 = tpu.iota {dimensions = array<i32: 0>} : vector<16x128xi32>
    %c0_i32 = arith.constant 0 : i32
    %21 = vector.broadcast %c0_i32 : i32 to vector<16x128xi32>
    %22 = arith.cmpi sgt, %20, %21 : vector<16x128xi32>
    %c15_i32 = arith.constant 15 : i32
    %23 = vector.broadcast %c15_i32 : i32 to vector<16x128xi32>
    %24 = arith.cmpi slt, %20, %23 : vector<16x128xi32>
    %c0_26 = arith.constant 0 : index
    %c0_27 = arith.constant 0 : index
    %c0_28 = arith.constant 0 : index
    %25 = vector.load %arg2[%c0_26, %c0_27, %c0_28] : memref<1x336x128xf32, #tpu.memory_space<vmem>>, vector<1x16x128xf32>
    %26 = vector.shape_cast %25 : vector<1x16x128xf32> to vector<16x128xf32>
    %27 = vector.shape_cast %9 : vector<128xf32> to vector<1x128xf32>
    %28 = vector.broadcast %27 : vector<1x128xf32> to vector<16x128xf32>
    %29 = arith.mulf %26, %28 : vector<16x128xf32>
    %c1_i32 = arith.constant 1 : i32
    %30 = tpu.dynamic_rotate %26 by %c1_i32 dim 0 : vector<16x128xf32>, i32 -> vector<16x128xf32>
    %cst = arith.constant 0.000000e+00 : f32
    %31 = vector.broadcast %cst : f32 to vector<16x128xf32>
    %32 = arith.select %22, %30, %31 : vector<16x128xi1>, vector<16x128xf32>
    %33 = vector.shape_cast %7 : vector<128xf32> to vector<1x128xf32>
    %34 = vector.broadcast %33 : vector<1x128xf32> to vector<16x128xf32>
    %35 = arith.mulf %32, %34 : vector<16x128xf32>
    %36 = arith.addf %29, %35 : vector<16x128xf32>
    %c15_i32_29 = arith.constant 15 : i32
    %37 = tpu.dynamic_rotate %26 by %c15_i32_29 dim 0 : vector<16x128xf32>, i32 -> vector<16x128xf32>
    %cst_30 = arith.constant 0.000000e+00 : f32
    %38 = vector.broadcast %cst_30 : f32 to vector<16x128xf32>
    %39 = arith.select %24, %37, %38 : vector<16x128xi1>, vector<16x128xf32>
    %40 = vector.shape_cast %11 : vector<128xf32> to vector<1x128xf32>
    %41 = vector.broadcast %40 : vector<1x128xf32> to vector<16x128xf32>
    %42 = arith.mulf %39, %41 : vector<16x128xf32>
    %43 = arith.addf %36, %42 : vector<16x128xf32>
    %c0_31 = arith.constant 0 : index
    %c16 = arith.constant 16 : index
    %c0_32 = arith.constant 0 : index
    %44 = vector.load %arg2[%c0_31, %c16, %c0_32] : memref<1x336x128xf32, #tpu.memory_space<vmem>>, vector<1x16x128xf32>
    %45 = vector.shape_cast %44 : vector<1x16x128xf32> to vector<16x128xf32>
    %46 = vector.shape_cast %15 : vector<128xf32> to vector<1x128xf32>
    %47 = vector.broadcast %46 : vector<1x128xf32> to vector<16x128xf32>
    %48 = arith.mulf %45, %47 : vector<16x128xf32>
    %49 = arith.addf %43, %48 : vector<16x128xf32>
    %c1_i32_33 = arith.constant 1 : i32
    %50 = tpu.dynamic_rotate %45 by %c1_i32_33 dim 0 : vector<16x128xf32>, i32 -> vector<16x128xf32>
    %cst_34 = arith.constant 0.000000e+00 : f32
    %51 = vector.broadcast %cst_34 : f32 to vector<16x128xf32>
    %52 = arith.select %22, %50, %51 : vector<16x128xi1>, vector<16x128xf32>
    %53 = vector.shape_cast %13 : vector<128xf32> to vector<1x128xf32>
    %54 = vector.broadcast %53 : vector<1x128xf32> to vector<16x128xf32>
    %55 = arith.mulf %52, %54 : vector<16x128xf32>
    %56 = arith.addf %49, %55 : vector<16x128xf32>
    %c15_i32_35 = arith.constant 15 : i32
    %57 = tpu.dynamic_rotate %45 by %c15_i32_35 dim 0 : vector<16x128xf32>, i32 -> vector<16x128xf32>
    %cst_36 = arith.constant 0.000000e+00 : f32
    %58 = vector.broadcast %cst_36 : f32 to vector<16x128xf32>
    %59 = arith.select %24, %57, %58 : vector<16x128xi1>, vector<16x128xf32>
    %60 = vector.shape_cast %17 : vector<128xf32> to vector<1x128xf32>
    %61 = vector.broadcast %60 : vector<1x128xf32> to vector<16x128xf32>
    %62 = arith.mulf %59, %61 : vector<16x128xf32>
    %63 = arith.addf %56, %62 : vector<16x128xf32>
    %64 = vector.shape_cast %19 : vector<128xf32> to vector<1x128xf32>
    %65 = vector.broadcast %64 : vector<1x128xf32> to vector<16x128xf32>
    %66 = arith.addf %63, %65 : vector<16x128xf32>
    %c0_37 = arith.constant 0 : index
    %c0_38 = arith.constant 0 : index
    %c0_39 = arith.constant 0 : index
    %67 = vector.load %arg5[%c0_37, %c0_38, %c0_39] : memref<1x336x128xf32, #tpu.memory_space<vmem>>, vector<1x16x128xf32>
    %68 = vector.shape_cast %67 : vector<1x16x128xf32> to vector<16x128xf32>
    %69 = vector.shape_cast %66 : vector<16x128xf32> to vector<1x16x128xf32>
    tpu.vector_store %arg5[%c0_37, %c0_38, %c0_39], %69 {strides = array<i32>} : memref<1x336x128xf32, #tpu.memory_space<vmem>>, vector<1x16x128xf32>,
    %c1_i32_40 = arith.constant 1 : i32
    %c14_i32 = arith.constant 14 : i32
    %70 = arith.addi %c1_i32_40, %c14_i32 : i32
    %c1_i32_41 = arith.constant 1 : i32
    scf.for %arg6 = %c1_i32_40 to %70 step %c1_i32_41  : i32 {
      %c1_i32_126 = arith.constant 1 : i32
      %308 = arith.subi %arg6, %c1_i32_126 : i32
      %c16_i32 = arith.constant 16 : i32
      %309 = arith.muli %308, %c16_i32 : i32
      %c0_i32_127 = arith.constant 0 : i32
      %310 = arith.addi %c0_i32_127, %309 : i32
      %311 = tpu.assume_multiple %310, 8 : i32
      %c0_128 = arith.constant 0 : index
      %312 = arith.index_cast %311 : i32 to index
      %c0_129 = arith.constant 0 : index
      %313 = vector.load %arg2[%c0_128, %312, %c0_129] : memref<1x336x128xf32, #tpu.memory_space<vmem>>, vector<1x16x128xf32>
      %314 = vector.shape_cast %313 : vector<1x16x128xf32> to vector<16x128xf32>
      %315 = vector.shape_cast %3 : vector<128xf32> to vector<1x128xf32>
      %316 = vector.broadcast %315 : vector<1x128xf32> to vector<16x128xf32>
      %317 = arith.mulf %314, %316 : vector<16x128xf32>
      %c1_i32_130 = arith.constant 1 : i32
      %318 = tpu.dynamic_rotate %314 by %c1_i32_130 dim 0 : vector<16x128xf32>, i32 -> vector<16x128xf32>
      %cst_131 = arith.constant 0.000000e+00 : f32
      %319 = vector.broadcast %cst_131 : f32 to vector<16x128xf32>
      %320 = arith.select %22, %318, %319 : vector<16x128xi1>, vector<16x128xf32>
      %321 = vector.shape_cast %1 : vector<128xf32> to vector<1x128xf32>
      %322 = vector.broadcast %321 : vector<1x128xf32> to vector<16x128xf32>
      %323 = arith.mulf %320, %322 : vector<16x128xf32>
      %324 = arith.addf %317, %323 : vector<16x128xf32>
      %c15_i32_132 = arith.constant 15 : i32
      %325 = tpu.dynamic_rotate %314 by %c15_i32_132 dim 0 : vector<16x128xf32>, i32 -> vector<16x128xf32>
      %cst_133 = arith.constant 0.000000e+00 : f32
      %326 = vector.broadcast %cst_133 : f32 to vector<16x128xf32>
      %327 = arith.select %24, %325, %326 : vector<16x128xi1>, vector<16x128xf32>
      %328 = vector.shape_cast %5 : vector<128xf32> to vector<1x128xf32>
      %329 = vector.broadcast %328 : vector<1x128xf32> to vector<16x128xf32>
      %330 = arith.mulf %327, %329 : vector<16x128xf32>
      %331 = arith.addf %324, %330 : vector<16x128xf32>
      %c16_i32_134 = arith.constant 16 : i32
      %332 = arith.muli %arg6, %c16_i32_134 : i32
      %c0_i32_135 = arith.constant 0 : i32
      %333 = arith.addi %c0_i32_135, %332 : i32
      %334 = tpu.assume_multiple %333, 8 : i32
      %c0_136 = arith.constant 0 : index
      %335 = arith.index_cast %334 : i32 to index
      %c0_137 = arith.constant 0 : index
      %336 = vector.load %arg2[%c0_136, %335, %c0_137] : memref<1x336x128xf32, #tpu.memory_space<vmem>>, vector<1x16x128xf32>
      %337 = vector.shape_cast %336 : vector<1x16x128xf32> to vector<16x128xf32>
      %338 = vector.shape_cast %9 : vector<128xf32> to vector<1x128xf32>
      %339 = vector.broadcast %338 : vector<1x128xf32> to vector<16x128xf32>
      %340 = arith.mulf %337, %339 : vector<16x128xf32>
      %341 = arith.addf %331, %340 : vector<16x128xf32>
      %c1_i32_138 = arith.constant 1 : i32
      %342 = tpu.dynamic_rotate %337 by %c1_i32_138 dim 0 : vector<16x128xf32>, i32 -> vector<16x128xf32>
      %cst_139 = arith.constant 0.000000e+00 : f32
      %343 = vector.broadcast %cst_139 : f32 to vector<16x128xf32>
      %344 = arith.select %22, %342, %343 : vector<16x128xi1>, vector<16x128xf32>
      %345 = vector.shape_cast %7 : vector<128xf32> to vector<1x128xf32>
      %346 = vector.broadcast %345 : vector<1x128xf32> to vector<16x128xf32>
      %347 = arith.mulf %344, %346 : vector<16x128xf32>
      %348 = arith.addf %341, %347 : vector<16x128xf32>
      %c15_i32_140 = arith.constant 15 : i32
      %349 = tpu.dynamic_rotate %337 by %c15_i32_140 dim 0 : vector<16x128xf32>, i32 -> vector<16x128xf32>
      %cst_141 = arith.constant 0.000000e+00 : f32
      %350 = vector.broadcast %cst_141 : f32 to vector<16x128xf32>
      %351 = arith.select %24, %349, %350 : vector<16x128xi1>, vector<16x128xf32>
      %352 = vector.shape_cast %11 : vector<128xf32> to vector<1x128xf32>
      %353 = vector.broadcast %352 : vector<1x128xf32> to vector<16x128xf32>
      %354 = arith.mulf %351, %353 : vector<16x128xf32>
      %355 = arith.addf %348, %354 : vector<16x128xf32>
      %c1_i32_142 = arith.constant 1 : i32
      %356 = arith.addi %arg6, %c1_i32_142 : i32
      %c16_i32_143 = arith.constant 16 : i32
      %357 = arith.muli %356, %c16_i32_143 : i32
      %c0_i32_144 = arith.constant 0 : i32
      %358 = arith.addi %c0_i32_144, %357 : i32
      %359 = tpu.assume_multiple %358, 8 : i32
      %c0_145 = arith.constant 0 : index
      %360 = arith.index_cast %359 : i32 to index
      %c0_146 = arith.constant 0 : index
      %361 = vector.load %arg2[%c0_145, %360, %c0_146] : memref<1x336x128xf32, #tpu.memory_space<vmem>>, vector<1x16x128xf32>
      %362 = vector.shape_cast %361 : vector<1x16x128xf32> to vector<16x128xf32>
      %363 = vector.shape_cast %15 : vector<128xf32> to vector<1x128xf32>
      %364 = vector.broadcast %363 : vector<1x128xf32> to vector<16x128xf32>
      %365 = arith.mulf %362, %364 : vector<16x128xf32>
      %366 = arith.addf %355, %365 : vector<16x128xf32>
      %c1_i32_147 = arith.constant 1 : i32
      %367 = tpu.dynamic_rotate %362 by %c1_i32_147 dim 0 : vector<16x128xf32>, i32 -> vector<16x128xf32>
      %cst_148 = arith.constant 0.000000e+00 : f32
      %368 = vector.broadcast %cst_148 : f32 to vector<16x128xf32>
      %369 = arith.select %22, %367, %368 : vector<16x128xi1>, vector<16x128xf32>
      %370 = vector.shape_cast %13 : vector<128xf32> to vector<1x128xf32>
      %371 = vector.broadcast %370 : vector<1x128xf32> to vector<16x128xf32>
      %372 = arith.mulf %369, %371 : vector<16x128xf32>
      %373 = arith.addf %366, %372 : vector<16x128xf32>
      %c15_i32_149 = arith.constant 15 : i32
      %374 = tpu.dynamic_rotate %362 by %c15_i32_149 dim 0 : vector<16x128xf32>, i32 -> vector<16x128xf32>
      %cst_150 = arith.constant 0.000000e+00 : f32
      %375 = vector.broadcast %cst_150 : f32 to vector<16x128xf32>
      %376 = arith.select %24, %374, %375 : vector<16x128xi1>, vector<16x128xf32>
      %377 = vector.shape_cast %17 : vector<128xf32> to vector<1x128xf32>
      %378 = vector.broadcast %377 : vector<1x128xf32> to vector<16x128xf32>
      %379 = arith.mulf %376, %378 : vector<16x128xf32>
      %380 = arith.addf %373, %379 : vector<16x128xf32>
      %381 = vector.shape_cast %19 : vector<128xf32> to vector<1x128xf32>
      %382 = vector.broadcast %381 : vector<1x128xf32> to vector<16x128xf32>
      %383 = arith.addf %380, %382 : vector<16x128xf32>
      %c16_i32_151 = arith.constant 16 : i32
      %384 = arith.muli %arg6, %c16_i32_151 : i32
      %c0_i32_152 = arith.constant 0 : i32
      %385 = arith.addi %c0_i32_152, %384 : i32
      %386 = tpu.assume_multiple %385, 8 : i32
      %c0_153 = arith.constant 0 : index
      %387 = arith.index_cast %386 : i32 to index
      %c0_154 = arith.constant 0 : index
      %388 = vector.load %arg5[%c0_153, %387, %c0_154] : memref<1x336x128xf32, #tpu.memory_space<vmem>>, vector<1x16x128xf32>
      %389 = vector.shape_cast %388 : vector<1x16x128xf32> to vector<16x128xf32>
      %390 = vector.shape_cast %383 : vector<16x128xf32> to vector<1x16x128xf32>
      tpu.vector_store %arg5[%c0_153, %387, %c0_154], %390 {strides = array<i32>} : memref<1x336x128xf32, #tpu.memory_space<vmem>>, vector<1x16x128xf32>,
    }
    %c14_i32_42 = arith.constant 14 : i32
    %c0_43 = arith.constant 0 : index
    %c224 = arith.constant 224 : index
    %c0_44 = arith.constant 0 : index
    %71 = vector.load %arg2[%c0_43, %c224, %c0_44] : memref<1x336x128xf32, #tpu.memory_space<vmem>>, vector<1x16x128xf32>
    %72 = vector.shape_cast %71 : vector<1x16x128xf32> to vector<16x128xf32>
    %73 = vector.shape_cast %3 : vector<128xf32> to vector<1x128xf32>
    %74 = vector.broadcast %73 : vector<1x128xf32> to vector<16x128xf32>
    %75 = arith.mulf %72, %74 : vector<16x128xf32>
    %c1_i32_45 = arith.constant 1 : i32
    %76 = tpu.dynamic_rotate %72 by %c1_i32_45 dim 0 : vector<16x128xf32>, i32 -> vector<16x128xf32>
    %cst_46 = arith.constant 0.000000e+00 : f32
    %77 = vector.broadcast %cst_46 : f32 to vector<16x128xf32>
    %78 = arith.select %22, %76, %77 : vector<16x128xi1>, vector<16x128xf32>
    %79 = vector.shape_cast %1 : vector<128xf32> to vector<1x128xf32>
    %80 = vector.broadcast %79 : vector<1x128xf32> to vector<16x128xf32>
    %81 = arith.mulf %78, %80 : vector<16x128xf32>
    %82 = arith.addf %75, %81 : vector<16x128xf32>
    %c15_i32_47 = arith.constant 15 : i32
    %83 = tpu.dynamic_rotate %72 by %c15_i32_47 dim 0 : vector<16x128xf32>, i32 -> vector<16x128xf32>
    %cst_48 = arith.constant 0.000000e+00 : f32
    %84 = vector.broadcast %cst_48 : f32 to vector<16x128xf32>
    %85 = arith.select %24, %83, %84 : vector<16x128xi1>, vector<16x128xf32>
    %86 = vector.shape_cast %5 : vector<128xf32> to vector<1x128xf32>
    %87 = vector.broadcast %86 : vector<1x128xf32> to vector<16x128xf32>
    %88 = arith.mulf %85, %87 : vector<16x128xf32>
    %89 = arith.addf %82, %88 : vector<16x128xf32>
    %c0_49 = arith.constant 0 : index
    %c240 = arith.constant 240 : index
    %c0_50 = arith.constant 0 : index
    %90 = vector.load %arg2[%c0_49, %c240, %c0_50] : memref<1x336x128xf32, #tpu.memory_space<vmem>>, vector<1x16x128xf32>
    %91 = vector.shape_cast %90 : vector<1x16x128xf32> to vector<16x128xf32>
    %92 = vector.shape_cast %9 : vector<128xf32> to vector<1x128xf32>
    %93 = vector.broadcast %92 : vector<1x128xf32> to vector<16x128xf32>
    %94 = arith.mulf %91, %93 : vector<16x128xf32>
    %95 = arith.addf %89, %94 : vector<16x128xf32>
    %c1_i32_51 = arith.constant 1 : i32
    %96 = tpu.dynamic_rotate %91 by %c1_i32_51 dim 0 : vector<16x128xf32>, i32 -> vector<16x128xf32>
    %cst_52 = arith.constant 0.000000e+00 : f32
    %97 = vector.broadcast %cst_52 : f32 to vector<16x128xf32>
    %98 = arith.select %22, %96, %97 : vector<16x128xi1>, vector<16x128xf32>
    %99 = vector.shape_cast %7 : vector<128xf32> to vector<1x128xf32>
    %100 = vector.broadcast %99 : vector<1x128xf32> to vector<16x128xf32>
    %101 = arith.mulf %98, %100 : vector<16x128xf32>
    %102 = arith.addf %95, %101 : vector<16x128xf32>
    %c15_i32_53 = arith.constant 15 : i32
    %103 = tpu.dynamic_rotate %91 by %c15_i32_53 dim 0 : vector<16x128xf32>, i32 -> vector<16x128xf32>
    %cst_54 = arith.constant 0.000000e+00 : f32
    %104 = vector.broadcast %cst_54 : f32 to vector<16x128xf32>
    %105 = arith.select %24, %103, %104 : vector<16x128xi1>, vector<16x128xf32>
    %106 = vector.shape_cast %11 : vector<128xf32> to vector<1x128xf32>
    %107 = vector.broadcast %106 : vector<1x128xf32> to vector<16x128xf32>
    %108 = arith.mulf %105, %107 : vector<16x128xf32>
    %109 = arith.addf %102, %108 : vector<16x128xf32>
    %110 = vector.shape_cast %19 : vector<128xf32> to vector<1x128xf32>
    %111 = vector.broadcast %110 : vector<1x128xf32> to vector<16x128xf32>
    %112 = arith.addf %109, %111 : vector<16x128xf32>
    %c0_55 = arith.constant 0 : index
    %c240_56 = arith.constant 240 : index
    %c0_57 = arith.constant 0 : index
    %113 = vector.load %arg5[%c0_55, %c240_56, %c0_57] : memref<1x336x128xf32, #tpu.memory_space<vmem>>, vector<1x16x128xf32>
    %114 = vector.shape_cast %113 : vector<1x16x128xf32> to vector<16x128xf32>
    %115 = vector.shape_cast %112 : vector<16x128xf32> to vector<1x16x128xf32>
    tpu.vector_store %arg5[%c0_55, %c240_56, %c0_57], %115 {strides = array<i32>} : memref<1x336x128xf32, #tpu.memory_space<vmem>>, vector<1x16x128xf32>,
    %116 = tpu.iota {dimensions = array<i32: 0>} : vector<8x128xi32>
    %c0_i32_58 = arith.constant 0 : i32
    %117 = vector.broadcast %c0_i32_58 : i32 to vector<8x128xi32>
    %118 = arith.cmpi sgt, %116, %117 : vector<8x128xi32>
    %c7_i32 = arith.constant 7 : i32
    %119 = vector.broadcast %c7_i32 : i32 to vector<8x128xi32>
    %120 = arith.cmpi slt, %116, %119 : vector<8x128xi32>
    %c0_59 = arith.constant 0 : index
    %c256 = arith.constant 256 : index
    %c0_60 = arith.constant 0 : index
    %121 = vector.load %arg2[%c0_59, %c256, %c0_60] : memref<1x336x128xf32, #tpu.memory_space<vmem>>, vector<1x8x128xf32>
    %122 = vector.shape_cast %121 : vector<1x8x128xf32> to vector<8x128xf32>
    %123 = vector.shape_cast %9 : vector<128xf32> to vector<1x128xf32>
    %124 = vector.broadcast %123 : vector<1x128xf32> to vector<8x128xf32>
    %125 = arith.mulf %122, %124 : vector<8x128xf32>
    %c1_i32_61 = arith.constant 1 : i32
    %126 = tpu.dynamic_rotate %122 by %c1_i32_61 dim 0 : vector<8x128xf32>, i32 -> vector<8x128xf32>
    %cst_62 = arith.constant 0.000000e+00 : f32
    %127 = vector.broadcast %cst_62 : f32 to vector<8x128xf32>
    %128 = arith.select %118, %126, %127 : vector<8x128xi1>, vector<8x128xf32>
    %129 = vector.shape_cast %7 : vector<128xf32> to vector<1x128xf32>
    %130 = vector.broadcast %129 : vector<1x128xf32> to vector<8x128xf32>
    %131 = arith.mulf %128, %130 : vector<8x128xf32>
    %132 = arith.addf %125, %131 : vector<8x128xf32>
    %c7_i32_63 = arith.constant 7 : i32
    %133 = tpu.dynamic_rotate %122 by %c7_i32_63 dim 0 : vector<8x128xf32>, i32 -> vector<8x128xf32>
    %cst_64 = arith.constant 0.000000e+00 : f32
    %134 = vector.broadcast %cst_64 : f32 to vector<8x128xf32>
    %135 = arith.select %120, %133, %134 : vector<8x128xi1>, vector<8x128xf32>
    %136 = vector.shape_cast %11 : vector<128xf32> to vector<1x128xf32>
    %137 = vector.broadcast %136 : vector<1x128xf32> to vector<8x128xf32>
    %138 = arith.mulf %135, %137 : vector<8x128xf32>
    %139 = arith.addf %132, %138 : vector<8x128xf32>
    %c0_65 = arith.constant 0 : index
    %c264 = arith.constant 264 : index
    %c0_66 = arith.constant 0 : index
    %140 = vector.load %arg2[%c0_65, %c264, %c0_66] : memref<1x336x128xf32, #tpu.memory_space<vmem>>, vector<1x8x128xf32>
    %141 = vector.shape_cast %140 : vector<1x8x128xf32> to vector<8x128xf32>
    %142 = vector.shape_cast %15 : vector<128xf32> to vector<1x128xf32>
    %143 = vector.broadcast %142 : vector<1x128xf32> to vector<8x128xf32>
    %144 = arith.mulf %141, %143 : vector<8x128xf32>
    %145 = arith.addf %139, %144 : vector<8x128xf32>
    %c1_i32_67 = arith.constant 1 : i32
    %146 = tpu.dynamic_rotate %141 by %c1_i32_67 dim 0 : vector<8x128xf32>, i32 -> vector<8x128xf32>
    %cst_68 = arith.constant 0.000000e+00 : f32
    %147 = vector.broadcast %cst_68 : f32 to vector<8x128xf32>
    %148 = arith.select %118, %146, %147 : vector<8x128xi1>, vector<8x128xf32>
    %149 = vector.shape_cast %13 : vector<128xf32> to vector<1x128xf32>
    %150 = vector.broadcast %149 : vector<1x128xf32> to vector<8x128xf32>
    %151 = arith.mulf %148, %150 : vector<8x128xf32>
    %152 = arith.addf %145, %151 : vector<8x128xf32>
    %c7_i32_69 = arith.constant 7 : i32
    %153 = tpu.dynamic_rotate %141 by %c7_i32_69 dim 0 : vector<8x128xf32>, i32 -> vector<8x128xf32>
    %cst_70 = arith.constant 0.000000e+00 : f32
    %154 = vector.broadcast %cst_70 : f32 to vector<8x128xf32>
    %155 = arith.select %120, %153, %154 : vector<8x128xi1>, vector<8x128xf32>
    %156 = vector.shape_cast %17 : vector<128xf32> to vector<1x128xf32>
    %157 = vector.broadcast %156 : vector<1x128xf32> to vector<8x128xf32>
    %158 = arith.mulf %155, %157 : vector<8x128xf32>
    %159 = arith.addf %152, %158 : vector<8x128xf32>
    %160 = vector.shape_cast %19 : vector<128xf32> to vector<1x128xf32>
    %161 = vector.broadcast %160 : vector<1x128xf32> to vector<8x128xf32>
    %162 = arith.addf %159, %161 : vector<8x128xf32>
    %c0_71 = arith.constant 0 : index
    %c256_72 = arith.constant 256 : index
    %c0_73 = arith.constant 0 : index
    %163 = vector.load %arg5[%c0_71, %c256_72, %c0_73] : memref<1x336x128xf32, #tpu.memory_space<vmem>>, vector<1x8x128xf32>
    %164 = vector.shape_cast %163 : vector<1x8x128xf32> to vector<8x128xf32>
    %165 = vector.shape_cast %162 : vector<8x128xf32> to vector<1x8x128xf32>
    tpu.vector_store %arg5[%c0_71, %c256_72, %c0_73], %165 {strides = array<i32>} : memref<1x336x128xf32, #tpu.memory_space<vmem>>, vector<1x8x128xf32>,
    %c1_i32_74 = arith.constant 1 : i32
    %c6_i32 = arith.constant 6 : i32
    %166 = arith.addi %c1_i32_74, %c6_i32 : i32
    %c1_i32_75 = arith.constant 1 : i32
    scf.for %arg6 = %c1_i32_74 to %166 step %c1_i32_75  : i32 {
      %c1_i32_126 = arith.constant 1 : i32
      %308 = arith.subi %arg6, %c1_i32_126 : i32
      %c8_i32 = arith.constant 8 : i32
      %309 = arith.muli %308, %c8_i32 : i32
      %c256_i32 = arith.constant 256 : i32
      %310 = arith.addi %c256_i32, %309 : i32
      %311 = tpu.assume_multiple %310, 8 : i32
      %c0_127 = arith.constant 0 : index
      %312 = arith.index_cast %311 : i32 to index
      %c0_128 = arith.constant 0 : index
      %313 = vector.load %arg2[%c0_127, %312, %c0_128] : memref<1x336x128xf32, #tpu.memory_space<vmem>>, vector<1x8x128xf32>
      %314 = vector.shape_cast %313 : vector<1x8x128xf32> to vector<8x128xf32>
      %315 = vector.shape_cast %3 : vector<128xf32> to vector<1x128xf32>
      %316 = vector.broadcast %315 : vector<1x128xf32> to vector<8x128xf32>
      %317 = arith.mulf %314, %316 : vector<8x128xf32>
      %c1_i32_129 = arith.constant 1 : i32
      %318 = tpu.dynamic_rotate %314 by %c1_i32_129 dim 0 : vector<8x128xf32>, i32 -> vector<8x128xf32>
      %cst_130 = arith.constant 0.000000e+00 : f32
      %319 = vector.broadcast %cst_130 : f32 to vector<8x128xf32>
      %320 = arith.select %118, %318, %319 : vector<8x128xi1>, vector<8x128xf32>
      %321 = vector.shape_cast %1 : vector<128xf32> to vector<1x128xf32>
      %322 = vector.broadcast %321 : vector<1x128xf32> to vector<8x128xf32>
      %323 = arith.mulf %320, %322 : vector<8x128xf32>
      %324 = arith.addf %317, %323 : vector<8x128xf32>
      %c7_i32_131 = arith.constant 7 : i32
      %325 = tpu.dynamic_rotate %314 by %c7_i32_131 dim 0 : vector<8x128xf32>, i32 -> vector<8x128xf32>
      %cst_132 = arith.constant 0.000000e+00 : f32
      %326 = vector.broadcast %cst_132 : f32 to vector<8x128xf32>
      %327 = arith.select %120, %325, %326 : vector<8x128xi1>, vector<8x128xf32>
      %328 = vector.shape_cast %5 : vector<128xf32> to vector<1x128xf32>
      %329 = vector.broadcast %328 : vector<1x128xf32> to vector<8x128xf32>
      %330 = arith.mulf %327, %329 : vector<8x128xf32>
      %331 = arith.addf %324, %330 : vector<8x128xf32>
      %c8_i32_133 = arith.constant 8 : i32
      %332 = arith.muli %arg6, %c8_i32_133 : i32
      %c256_i32_134 = arith.constant 256 : i32
      %333 = arith.addi %c256_i32_134, %332 : i32
      %334 = tpu.assume_multiple %333, 8 : i32
      %c0_135 = arith.constant 0 : index
      %335 = arith.index_cast %334 : i32 to index
      %c0_136 = arith.constant 0 : index
      %336 = vector.load %arg2[%c0_135, %335, %c0_136] : memref<1x336x128xf32, #tpu.memory_space<vmem>>, vector<1x8x128xf32>
      %337 = vector.shape_cast %336 : vector<1x8x128xf32> to vector<8x128xf32>
      %338 = vector.shape_cast %9 : vector<128xf32> to vector<1x128xf32>
      %339 = vector.broadcast %338 : vector<1x128xf32> to vector<8x128xf32>
      %340 = arith.mulf %337, %339 : vector<8x128xf32>
      %341 = arith.addf %331, %340 : vector<8x128xf32>
      %c1_i32_137 = arith.constant 1 : i32
      %342 = tpu.dynamic_rotate %337 by %c1_i32_137 dim 0 : vector<8x128xf32>, i32 -> vector<8x128xf32>
      %cst_138 = arith.constant 0.000000e+00 : f32
      %343 = vector.broadcast %cst_138 : f32 to vector<8x128xf32>
      %344 = arith.select %118, %342, %343 : vector<8x128xi1>, vector<8x128xf32>
      %345 = vector.shape_cast %7 : vector<128xf32> to vector<1x128xf32>
      %346 = vector.broadcast %345 : vector<1x128xf32> to vector<8x128xf32>
      %347 = arith.mulf %344, %346 : vector<8x128xf32>
      %348 = arith.addf %341, %347 : vector<8x128xf32>
      %c7_i32_139 = arith.constant 7 : i32
      %349 = tpu.dynamic_rotate %337 by %c7_i32_139 dim 0 : vector<8x128xf32>, i32 -> vector<8x128xf32>
      %cst_140 = arith.constant 0.000000e+00 : f32
      %350 = vector.broadcast %cst_140 : f32 to vector<8x128xf32>
      %351 = arith.select %120, %349, %350 : vector<8x128xi1>, vector<8x128xf32>
      %352 = vector.shape_cast %11 : vector<128xf32> to vector<1x128xf32>
      %353 = vector.broadcast %352 : vector<1x128xf32> to vector<8x128xf32>
      %354 = arith.mulf %351, %353 : vector<8x128xf32>
      %355 = arith.addf %348, %354 : vector<8x128xf32>
      %c1_i32_141 = arith.constant 1 : i32
      %356 = arith.addi %arg6, %c1_i32_141 : i32
      %c8_i32_142 = arith.constant 8 : i32
      %357 = arith.muli %356, %c8_i32_142 : i32
      %c256_i32_143 = arith.constant 256 : i32
      %358 = arith.addi %c256_i32_143, %357 : i32
      %359 = tpu.assume_multiple %358, 8 : i32
      %c0_144 = arith.constant 0 : index
      %360 = arith.index_cast %359 : i32 to index
      %c0_145 = arith.constant 0 : index
      %361 = vector.load %arg2[%c0_144, %360, %c0_145] : memref<1x336x128xf32, #tpu.memory_space<vmem>>, vector<1x8x128xf32>
      %362 = vector.shape_cast %361 : vector<1x8x128xf32> to vector<8x128xf32>
      %363 = vector.shape_cast %15 : vector<128xf32> to vector<1x128xf32>
      %364 = vector.broadcast %363 : vector<1x128xf32> to vector<8x128xf32>
      %365 = arith.mulf %362, %364 : vector<8x128xf32>
      %366 = arith.addf %355, %365 : vector<8x128xf32>
      %c1_i32_146 = arith.constant 1 : i32
      %367 = tpu.dynamic_rotate %362 by %c1_i32_146 dim 0 : vector<8x128xf32>, i32 -> vector<8x128xf32>
      %cst_147 = arith.constant 0.000000e+00 : f32
      %368 = vector.broadcast %cst_147 : f32 to vector<8x128xf32>
      %369 = arith.select %118, %367, %368 : vector<8x128xi1>, vector<8x128xf32>
      %370 = vector.shape_cast %13 : vector<128xf32> to vector<1x128xf32>
      %371 = vector.broadcast %370 : vector<1x128xf32> to vector<8x128xf32>
      %372 = arith.mulf %369, %371 : vector<8x128xf32>
      %373 = arith.addf %366, %372 : vector<8x128xf32>
      %c7_i32_148 = arith.constant 7 : i32
      %374 = tpu.dynamic_rotate %362 by %c7_i32_148 dim 0 : vector<8x128xf32>, i32 -> vector<8x128xf32>
      %cst_149 = arith.constant 0.000000e+00 : f32
      %375 = vector.broadcast %cst_149 : f32 to vector<8x128xf32>
      %376 = arith.select %120, %374, %375 : vector<8x128xi1>, vector<8x128xf32>
      %377 = vector.shape_cast %17 : vector<128xf32> to vector<1x128xf32>
      %378 = vector.broadcast %377 : vector<1x128xf32> to vector<8x128xf32>
      %379 = arith.mulf %376, %378 : vector<8x128xf32>
      %380 = arith.addf %373, %379 : vector<8x128xf32>
      %381 = vector.shape_cast %19 : vector<128xf32> to vector<1x128xf32>
      %382 = vector.broadcast %381 : vector<1x128xf32> to vector<8x128xf32>
      %383 = arith.addf %380, %382 : vector<8x128xf32>
      %c8_i32_150 = arith.constant 8 : i32
      %384 = arith.muli %arg6, %c8_i32_150 : i32
      %c256_i32_151 = arith.constant 256 : i32
      %385 = arith.addi %c256_i32_151, %384 : i32
      %386 = tpu.assume_multiple %385, 8 : i32
      %c0_152 = arith.constant 0 : index
      %387 = arith.index_cast %386 : i32 to index
      %c0_153 = arith.constant 0 : index
      %388 = vector.load %arg5[%c0_152, %387, %c0_153] : memref<1x336x128xf32, #tpu.memory_space<vmem>>, vector<1x8x128xf32>
      %389 = vector.shape_cast %388 : vector<1x8x128xf32> to vector<8x128xf32>
      %390 = vector.shape_cast %383 : vector<8x128xf32> to vector<1x8x128xf32>
      tpu.vector_store %arg5[%c0_152, %387, %c0_153], %390 {strides = array<i32>} : memref<1x336x128xf32, #tpu.memory_space<vmem>>, vector<1x8x128xf32>,
    }
    %c6_i32_76 = arith.constant 6 : i32
    %c0_77 = arith.constant 0 : index
    %c304 = arith.constant 304 : index
    %c0_78 = arith.constant 0 : index
    %167 = vector.load %arg2[%c0_77, %c304, %c0_78] : memref<1x336x128xf32, #tpu.memory_space<vmem>>, vector<1x8x128xf32>
    %168 = vector.shape_cast %167 : vector<1x8x128xf32> to vector<8x128xf32>
    %169 = vector.shape_cast %3 : vector<128xf32> to vector<1x128xf32>
    %170 = vector.broadcast %169 : vector<1x128xf32> to vector<8x128xf32>
    %171 = arith.mulf %168, %170 : vector<8x128xf32>
    %c1_i32_79 = arith.constant 1 : i32
    %172 = tpu.dynamic_rotate %168 by %c1_i32_79 dim 0 : vector<8x128xf32>, i32 -> vector<8x128xf32>
    %cst_80 = arith.constant 0.000000e+00 : f32
    %173 = vector.broadcast %cst_80 : f32 to vector<8x128xf32>
    %174 = arith.select %118, %172, %173 : vector<8x128xi1>, vector<8x128xf32>
    %175 = vector.shape_cast %1 : vector<128xf32> to vector<1x128xf32>
    %176 = vector.broadcast %175 : vector<1x128xf32> to vector<8x128xf32>
    %177 = arith.mulf %174, %176 : vector<8x128xf32>
    %178 = arith.addf %171, %177 : vector<8x128xf32>
    %c7_i32_81 = arith.constant 7 : i32
    %179 = tpu.dynamic_rotate %168 by %c7_i32_81 dim 0 : vector<8x128xf32>, i32 -> vector<8x128xf32>
    %cst_82 = arith.constant 0.000000e+00 : f32
    %180 = vector.broadcast %cst_82 : f32 to vector<8x128xf32>
    %181 = arith.select %120, %179, %180 : vector<8x128xi1>, vector<8x128xf32>
    %182 = vector.shape_cast %5 : vector<128xf32> to vector<1x128xf32>
    %183 = vector.broadcast %182 : vector<1x128xf32> to vector<8x128xf32>
    %184 = arith.mulf %181, %183 : vector<8x128xf32>
    %185 = arith.addf %178, %184 : vector<8x128xf32>
    %c0_83 = arith.constant 0 : index
    %c312 = arith.constant 312 : index
    %c0_84 = arith.constant 0 : index
    %186 = vector.load %arg2[%c0_83, %c312, %c0_84] : memref<1x336x128xf32, #tpu.memory_space<vmem>>, vector<1x8x128xf32>
    %187 = vector.shape_cast %186 : vector<1x8x128xf32> to vector<8x128xf32>
    %188 = vector.shape_cast %9 : vector<128xf32> to vector<1x128xf32>
    %189 = vector.broadcast %188 : vector<1x128xf32> to vector<8x128xf32>
    %190 = arith.mulf %187, %189 : vector<8x128xf32>
    %191 = arith.addf %185, %190 : vector<8x128xf32>
    %c1_i32_85 = arith.constant 1 : i32
    %192 = tpu.dynamic_rotate %187 by %c1_i32_85 dim 0 : vector<8x128xf32>, i32 -> vector<8x128xf32>
    %cst_86 = arith.constant 0.000000e+00 : f32
    %193 = vector.broadcast %cst_86 : f32 to vector<8x128xf32>
    %194 = arith.select %118, %192, %193 : vector<8x128xi1>, vector<8x128xf32>
    %195 = vector.shape_cast %7 : vector<128xf32> to vector<1x128xf32>
    %196 = vector.broadcast %195 : vector<1x128xf32> to vector<8x128xf32>
    %197 = arith.mulf %194, %196 : vector<8x128xf32>
    %198 = arith.addf %191, %197 : vector<8x128xf32>
    %c7_i32_87 = arith.constant 7 : i32
    %199 = tpu.dynamic_rotate %187 by %c7_i32_87 dim 0 : vector<8x128xf32>, i32 -> vector<8x128xf32>
    %cst_88 = arith.constant 0.000000e+00 : f32
    %200 = vector.broadcast %cst_88 : f32 to vector<8x128xf32>
    %201 = arith.select %120, %199, %200 : vector<8x128xi1>, vector<8x128xf32>
    %202 = vector.shape_cast %11 : vector<128xf32> to vector<1x128xf32>
    %203 = vector.broadcast %202 : vector<1x128xf32> to vector<8x128xf32>
    %204 = arith.mulf %201, %203 : vector<8x128xf32>
    %205 = arith.addf %198, %204 : vector<8x128xf32>
    %206 = vector.shape_cast %19 : vector<128xf32> to vector<1x128xf32>
    %207 = vector.broadcast %206 : vector<1x128xf32> to vector<8x128xf32>
    %208 = arith.addf %205, %207 : vector<8x128xf32>
    %c0_89 = arith.constant 0 : index
    %c312_90 = arith.constant 312 : index
    %c0_91 = arith.constant 0 : index
    %209 = vector.load %arg5[%c0_89, %c312_90, %c0_91] : memref<1x336x128xf32, #tpu.memory_space<vmem>>, vector<1x8x128xf32>
    %210 = vector.shape_cast %209 : vector<1x8x128xf32> to vector<8x128xf32>
    %211 = vector.shape_cast %208 : vector<8x128xf32> to vector<1x8x128xf32>
    tpu.vector_store %arg5[%c0_89, %c312_90, %c0_91], %211 {strides = array<i32>} : memref<1x336x128xf32, #tpu.memory_space<vmem>>, vector<1x8x128xf32>,
    %212 = tpu.iota {dimensions = array<i32: 0>} : vector<4x128xi32>
    %c0_i32_92 = arith.constant 0 : i32
    %213 = vector.broadcast %c0_i32_92 : i32 to vector<4x128xi32>
    %214 = arith.cmpi sgt, %212, %213 : vector<4x128xi32>
    %c3_i32 = arith.constant 3 : i32
    %215 = vector.broadcast %c3_i32 : i32 to vector<4x128xi32>
    %216 = arith.cmpi slt, %212, %215 : vector<4x128xi32>
    %c0_93 = arith.constant 0 : index
    %c320 = arith.constant 320 : index
    %c0_94 = arith.constant 0 : index
    %217 = vector.load %arg2[%c0_93, %c320, %c0_94] : memref<1x336x128xf32, #tpu.memory_space<vmem>>, vector<1x4x128xf32>
    %218 = vector.shape_cast %217 : vector<1x4x128xf32> to vector<4x128xf32>
    %219 = vector.shape_cast %9 : vector<128xf32> to vector<1x128xf32>
    %220 = vector.broadcast %219 : vector<1x128xf32> to vector<4x128xf32>
    %221 = arith.mulf %218, %220 : vector<4x128xf32>
    %c1_i32_95 = arith.constant 1 : i32
    %222 = tpu.dynamic_rotate %218 by %c1_i32_95 dim 0 : vector<4x128xf32>, i32 -> vector<4x128xf32>
    %cst_96 = arith.constant 0.000000e+00 : f32
    %223 = vector.broadcast %cst_96 : f32 to vector<4x128xf32>
    %224 = arith.select %214, %222, %223 : vector<4x128xi1>, vector<4x128xf32>
    %225 = vector.shape_cast %7 : vector<128xf32> to vector<1x128xf32>
    %226 = vector.broadcast %225 : vector<1x128xf32> to vector<4x128xf32>
    %227 = arith.mulf %224, %226 : vector<4x128xf32>
    %228 = arith.addf %221, %227 : vector<4x128xf32>
    %c3_i32_97 = arith.constant 3 : i32
    %229 = tpu.dynamic_rotate %218 by %c3_i32_97 dim 0 : vector<4x128xf32>, i32 -> vector<4x128xf32>
    %cst_98 = arith.constant 0.000000e+00 : f32
    %230 = vector.broadcast %cst_98 : f32 to vector<4x128xf32>
    %231 = arith.select %216, %229, %230 : vector<4x128xi1>, vector<4x128xf32>
    %232 = vector.shape_cast %11 : vector<128xf32> to vector<1x128xf32>
    %233 = vector.broadcast %232 : vector<1x128xf32> to vector<4x128xf32>
    %234 = arith.mulf %231, %233 : vector<4x128xf32>
    %235 = arith.addf %228, %234 : vector<4x128xf32>
    %c0_99 = arith.constant 0 : index
    %c324 = arith.constant 324 : index
    %c0_100 = arith.constant 0 : index
    %236 = vector.load %arg2[%c0_99, %c324, %c0_100] : memref<1x336x128xf32, #tpu.memory_space<vmem>>, vector<1x4x128xf32>
    %237 = vector.shape_cast %236 : vector<1x4x128xf32> to vector<4x128xf32>
    %238 = vector.shape_cast %15 : vector<128xf32> to vector<1x128xf32>
    %239 = vector.broadcast %238 : vector<1x128xf32> to vector<4x128xf32>
    %240 = arith.mulf %237, %239 : vector<4x128xf32>
    %241 = arith.addf %235, %240 : vector<4x128xf32>
    %c1_i32_101 = arith.constant 1 : i32
    %242 = tpu.dynamic_rotate %237 by %c1_i32_101 dim 0 : vector<4x128xf32>, i32 -> vector<4x128xf32>
    %cst_102 = arith.constant 0.000000e+00 : f32
    %243 = vector.broadcast %cst_102 : f32 to vector<4x128xf32>
    %244 = arith.select %214, %242, %243 : vector<4x128xi1>, vector<4x128xf32>
    %245 = vector.shape_cast %13 : vector<128xf32> to vector<1x128xf32>
    %246 = vector.broadcast %245 : vector<1x128xf32> to vector<4x128xf32>
    %247 = arith.mulf %244, %246 : vector<4x128xf32>
    %248 = arith.addf %241, %247 : vector<4x128xf32>
    %c3_i32_103 = arith.constant 3 : i32
    %249 = tpu.dynamic_rotate %237 by %c3_i32_103 dim 0 : vector<4x128xf32>, i32 -> vector<4x128xf32>
    %cst_104 = arith.constant 0.000000e+00 : f32
    %250 = vector.broadcast %cst_104 : f32 to vector<4x128xf32>
    %251 = arith.select %216, %249, %250 : vector<4x128xi1>, vector<4x128xf32>
    %252 = vector.shape_cast %17 : vector<128xf32> to vector<1x128xf32>
    %253 = vector.broadcast %252 : vector<1x128xf32> to vector<4x128xf32>
    %254 = arith.mulf %251, %253 : vector<4x128xf32>
    %255 = arith.addf %248, %254 : vector<4x128xf32>
    %256 = vector.shape_cast %19 : vector<128xf32> to vector<1x128xf32>
    %257 = vector.broadcast %256 : vector<1x128xf32> to vector<4x128xf32>
    %258 = arith.addf %255, %257 : vector<4x128xf32>
    %c0_105 = arith.constant 0 : index
    %c320_106 = arith.constant 320 : index
    %c0_107 = arith.constant 0 : index
    %259 = vector.load %arg5[%c0_105, %c320_106, %c0_107] : memref<1x336x128xf32, #tpu.memory_space<vmem>>, vector<1x4x128xf32>
    %260 = vector.shape_cast %259 : vector<1x4x128xf32> to vector<4x128xf32>
    %261 = vector.shape_cast %258 : vector<4x128xf32> to vector<1x4x128xf32>
    tpu.vector_store %arg5[%c0_105, %c320_106, %c0_107], %261 {strides = array<i32>} : memref<1x336x128xf32, #tpu.memory_space<vmem>>, vector<1x4x128xf32>,
    %c1_i32_108 = arith.constant 1 : i32
    %c2_i32 = arith.constant 2 : i32
    %262 = arith.addi %c1_i32_108, %c2_i32 : i32
    %c1_i32_109 = arith.constant 1 : i32
    scf.for %arg6 = %c1_i32_108 to %262 step %c1_i32_109  : i32 {
      %c1_i32_126 = arith.constant 1 : i32
      %308 = arith.subi %arg6, %c1_i32_126 : i32
      %c4_i32 = arith.constant 4 : i32
      %309 = arith.muli %308, %c4_i32 : i32
      %c320_i32 = arith.constant 320 : i32
      %310 = arith.addi %c320_i32, %309 : i32
      %c0_127 = arith.constant 0 : index
      %311 = arith.index_cast %310 : i32 to index
      %c0_128 = arith.constant 0 : index
      %312 = vector.load %arg2[%c0_127, %311, %c0_128] : memref<1x336x128xf32, #tpu.memory_space<vmem>>, vector<1x4x128xf32>
      %313 = vector.shape_cast %312 : vector<1x4x128xf32> to vector<4x128xf32>
      %314 = vector.shape_cast %3 : vector<128xf32> to vector<1x128xf32>
      %315 = vector.broadcast %314 : vector<1x128xf32> to vector<4x128xf32>
      %316 = arith.mulf %313, %315 : vector<4x128xf32>
      %c1_i32_129 = arith.constant 1 : i32
      %317 = tpu.dynamic_rotate %313 by %c1_i32_129 dim 0 : vector<4x128xf32>, i32 -> vector<4x128xf32>
      %cst_130 = arith.constant 0.000000e+00 : f32
      %318 = vector.broadcast %cst_130 : f32 to vector<4x128xf32>
      %319 = arith.select %214, %317, %318 : vector<4x128xi1>, vector<4x128xf32>
      %320 = vector.shape_cast %1 : vector<128xf32> to vector<1x128xf32>
      %321 = vector.broadcast %320 : vector<1x128xf32> to vector<4x128xf32>
      %322 = arith.mulf %319, %321 : vector<4x128xf32>
      %323 = arith.addf %316, %322 : vector<4x128xf32>
      %c3_i32_131 = arith.constant 3 : i32
      %324 = tpu.dynamic_rotate %313 by %c3_i32_131 dim 0 : vector<4x128xf32>, i32 -> vector<4x128xf32>
      %cst_132 = arith.constant 0.000000e+00 : f32
      %325 = vector.broadcast %cst_132 : f32 to vector<4x128xf32>
      %326 = arith.select %216, %324, %325 : vector<4x128xi1>, vector<4x128xf32>
      %327 = vector.shape_cast %5 : vector<128xf32> to vector<1x128xf32>
      %328 = vector.broadcast %327 : vector<1x128xf32> to vector<4x128xf32>
      %329 = arith.mulf %326, %328 : vector<4x128xf32>
      %330 = arith.addf %323, %329 : vector<4x128xf32>
      %c4_i32_133 = arith.constant 4 : i32
      %331 = arith.muli %arg6, %c4_i32_133 : i32
      %c320_i32_134 = arith.constant 320 : i32
      %332 = arith.addi %c320_i32_134, %331 : i32
      %c0_135 = arith.constant 0 : index
      %333 = arith.index_cast %332 : i32 to index
      %c0_136 = arith.constant 0 : index
      %334 = vector.load %arg2[%c0_135, %333, %c0_136] : memref<1x336x128xf32, #tpu.memory_space<vmem>>, vector<1x4x128xf32>
      %335 = vector.shape_cast %334 : vector<1x4x128xf32> to vector<4x128xf32>
      %336 = vector.shape_cast %9 : vector<128xf32> to vector<1x128xf32>
      %337 = vector.broadcast %336 : vector<1x128xf32> to vector<4x128xf32>
      %338 = arith.mulf %335, %337 : vector<4x128xf32>
      %339 = arith.addf %330, %338 : vector<4x128xf32>
      %c1_i32_137 = arith.constant 1 : i32
      %340 = tpu.dynamic_rotate %335 by %c1_i32_137 dim 0 : vector<4x128xf32>, i32 -> vector<4x128xf32>
      %cst_138 = arith.constant 0.000000e+00 : f32
      %341 = vector.broadcast %cst_138 : f32 to vector<4x128xf32>
      %342 = arith.select %214, %340, %341 : vector<4x128xi1>, vector<4x128xf32>
      %343 = vector.shape_cast %7 : vector<128xf32> to vector<1x128xf32>
      %344 = vector.broadcast %343 : vector<1x128xf32> to vector<4x128xf32>
      %345 = arith.mulf %342, %344 : vector<4x128xf32>
      %346 = arith.addf %339, %345 : vector<4x128xf32>
      %c3_i32_139 = arith.constant 3 : i32
      %347 = tpu.dynamic_rotate %335 by %c3_i32_139 dim 0 : vector<4x128xf32>, i32 -> vector<4x128xf32>
      %cst_140 = arith.constant 0.000000e+00 : f32
      %348 = vector.broadcast %cst_140 : f32 to vector<4x128xf32>
      %349 = arith.select %216, %347, %348 : vector<4x128xi1>, vector<4x128xf32>
      %350 = vector.shape_cast %11 : vector<128xf32> to vector<1x128xf32>
      %351 = vector.broadcast %350 : vector<1x128xf32> to vector<4x128xf32>
      %352 = arith.mulf %349, %351 : vector<4x128xf32>
      %353 = arith.addf %346, %352 : vector<4x128xf32>
      %c1_i32_141 = arith.constant 1 : i32
      %354 = arith.addi %arg6, %c1_i32_141 : i32
      %c4_i32_142 = arith.constant 4 : i32
      %355 = arith.muli %354, %c4_i32_142 : i32
      %c320_i32_143 = arith.constant 320 : i32
      %356 = arith.addi %c320_i32_143, %355 : i32
      %c0_144 = arith.constant 0 : index
      %357 = arith.index_cast %356 : i32 to index
      %c0_145 = arith.constant 0 : index
      %358 = vector.load %arg2[%c0_144, %357, %c0_145] : memref<1x336x128xf32, #tpu.memory_space<vmem>>, vector<1x4x128xf32>
      %359 = vector.shape_cast %358 : vector<1x4x128xf32> to vector<4x128xf32>
      %360 = vector.shape_cast %15 : vector<128xf32> to vector<1x128xf32>
      %361 = vector.broadcast %360 : vector<1x128xf32> to vector<4x128xf32>
      %362 = arith.mulf %359, %361 : vector<4x128xf32>
      %363 = arith.addf %353, %362 : vector<4x128xf32>
      %c1_i32_146 = arith.constant 1 : i32
      %364 = tpu.dynamic_rotate %359 by %c1_i32_146 dim 0 : vector<4x128xf32>, i32 -> vector<4x128xf32>
      %cst_147 = arith.constant 0.000000e+00 : f32
      %365 = vector.broadcast %cst_147 : f32 to vector<4x128xf32>
      %366 = arith.select %214, %364, %365 : vector<4x128xi1>, vector<4x128xf32>
      %367 = vector.shape_cast %13 : vector<128xf32> to vector<1x128xf32>
      %368 = vector.broadcast %367 : vector<1x128xf32> to vector<4x128xf32>
      %369 = arith.mulf %366, %368 : vector<4x128xf32>
      %370 = arith.addf %363, %369 : vector<4x128xf32>
      %c3_i32_148 = arith.constant 3 : i32
      %371 = tpu.dynamic_rotate %359 by %c3_i32_148 dim 0 : vector<4x128xf32>, i32 -> vector<4x128xf32>
      %cst_149 = arith.constant 0.000000e+00 : f32
      %372 = vector.broadcast %cst_149 : f32 to vector<4x128xf32>
      %373 = arith.select %216, %371, %372 : vector<4x128xi1>, vector<4x128xf32>
      %374 = vector.shape_cast %17 : vector<128xf32> to vector<1x128xf32>
      %375 = vector.broadcast %374 : vector<1x128xf32> to vector<4x128xf32>
      %376 = arith.mulf %373, %375 : vector<4x128xf32>
      %377 = arith.addf %370, %376 : vector<4x128xf32>
      %378 = vector.shape_cast %19 : vector<128xf32> to vector<1x128xf32>
      %379 = vector.broadcast %378 : vector<1x128xf32> to vector<4x128xf32>
      %380 = arith.addf %377, %379 : vector<4x128xf32>
      %c4_i32_150 = arith.constant 4 : i32
      %381 = arith.muli %arg6, %c4_i32_150 : i32
      %c320_i32_151 = arith.constant 320 : i32
      %382 = arith.addi %c320_i32_151, %381 : i32
      %c0_152 = arith.constant 0 : index
      %383 = arith.index_cast %382 : i32 to index
      %c0_153 = arith.constant 0 : index
      %384 = vector.load %arg5[%c0_152, %383, %c0_153] : memref<1x336x128xf32, #tpu.memory_space<vmem>>, vector<1x4x128xf32>
      %385 = vector.shape_cast %384 : vector<1x4x128xf32> to vector<4x128xf32>
      %386 = vector.shape_cast %380 : vector<4x128xf32> to vector<1x4x128xf32>
      tpu.vector_store %arg5[%c0_152, %383, %c0_153], %386 {strides = array<i32>} : memref<1x336x128xf32, #tpu.memory_space<vmem>>, vector<1x4x128xf32>,
    }
    %c2_i32_110 = arith.constant 2 : i32
    %c0_111 = arith.constant 0 : index
    %c328 = arith.constant 328 : index
    %c0_112 = arith.constant 0 : index
    %263 = vector.load %arg2[%c0_111, %c328, %c0_112] : memref<1x336x128xf32, #tpu.memory_space<vmem>>, vector<1x4x128xf32>
    %264 = vector.shape_cast %263 : vector<1x4x128xf32> to vector<4x128xf32>
    %265 = vector.shape_cast %3 : vector<128xf32> to vector<1x128xf32>
    %266 = vector.broadcast %265 : vector<1x128xf32> to vector<4x128xf32>
    %267 = arith.mulf %264, %266 : vector<4x128xf32>
    %c1_i32_113 = arith.constant 1 : i32
    %268 = tpu.dynamic_rotate %264 by %c1_i32_113 dim 0 : vector<4x128xf32>, i32 -> vector<4x128xf32>
    %cst_114 = arith.constant 0.000000e+00 : f32
    %269 = vector.broadcast %cst_114 : f32 to vector<4x128xf32>
    %270 = arith.select %214, %268, %269 : vector<4x128xi1>, vector<4x128xf32>
    %271 = vector.shape_cast %1 : vector<128xf32> to vector<1x128xf32>
    %272 = vector.broadcast %271 : vector<1x128xf32> to vector<4x128xf32>
    %273 = arith.mulf %270, %272 : vector<4x128xf32>
    %274 = arith.addf %267, %273 : vector<4x128xf32>
    %c3_i32_115 = arith.constant 3 : i32
    %275 = tpu.dynamic_rotate %264 by %c3_i32_115 dim 0 : vector<4x128xf32>, i32 -> vector<4x128xf32>
    %cst_116 = arith.constant 0.000000e+00 : f32
    %276 = vector.broadcast %cst_116 : f32 to vector<4x128xf32>
    %277 = arith.select %216, %275, %276 : vector<4x128xi1>, vector<4x128xf32>
    %278 = vector.shape_cast %5 : vector<128xf32> to vector<1x128xf32>
    %279 = vector.broadcast %278 : vector<1x128xf32> to vector<4x128xf32>
    %280 = arith.mulf %277, %279 : vector<4x128xf32>
    %281 = arith.addf %274, %280 : vector<4x128xf32>
    %c0_117 = arith.constant 0 : index
    %c332 = arith.constant 332 : index
    %c0_118 = arith.constant 0 : index
    %282 = vector.load %arg2[%c0_117, %c332, %c0_118] : memref<1x336x128xf32, #tpu.memory_space<vmem>>, vector<1x4x128xf32>
    %283 = vector.shape_cast %282 : vector<1x4x128xf32> to vector<4x128xf32>
    %284 = vector.shape_cast %9 : vector<128xf32> to vector<1x128xf32>
    %285 = vector.broadcast %284 : vector<1x128xf32> to vector<4x128xf32>
    %286 = arith.mulf %283, %285 : vector<4x128xf32>
    %287 = arith.addf %281, %286 : vector<4x128xf32>
    %c1_i32_119 = arith.constant 1 : i32
    %288 = tpu.dynamic_rotate %283 by %c1_i32_119 dim 0 : vector<4x128xf32>, i32 -> vector<4x128xf32>
    %cst_120 = arith.constant 0.000000e+00 : f32
    %289 = vector.broadcast %cst_120 : f32 to vector<4x128xf32>
    %290 = arith.select %214, %288, %289 : vector<4x128xi1>, vector<4x128xf32>
    %291 = vector.shape_cast %7 : vector<128xf32> to vector<1x128xf32>
    %292 = vector.broadcast %291 : vector<1x128xf32> to vector<4x128xf32>
    %293 = arith.mulf %290, %292 : vector<4x128xf32>
    %294 = arith.addf %287, %293 : vector<4x128xf32>
    %c3_i32_121 = arith.constant 3 : i32
    %295 = tpu.dynamic_rotate %283 by %c3_i32_121 dim 0 : vector<4x128xf32>, i32 -> vector<4x128xf32>
    %cst_122 = arith.constant 0.000000e+00 : f32
    %296 = vector.broadcast %cst_122 : f32 to vector<4x128xf32>
    %297 = arith.select %216, %295, %296 : vector<4x128xi1>, vector<4x128xf32>
    %298 = vector.shape_cast %11 : vector<128xf32> to vector<1x128xf32>
    %299 = vector.broadcast %298 : vector<1x128xf32> to vector<4x128xf32>
    %300 = arith.mulf %297, %299 : vector<4x128xf32>
    %301 = arith.addf %294, %300 : vector<4x128xf32>
    %302 = vector.shape_cast %19 : vector<128xf32> to vector<1x128xf32>
    %303 = vector.broadcast %302 : vector<1x128xf32> to vector<4x128xf32>
    %304 = arith.addf %301, %303 : vector<4x128xf32>
    %c0_123 = arith.constant 0 : index
    %c332_124 = arith.constant 332 : index
    %c0_125 = arith.constant 0 : index
    %305 = vector.load %arg5[%c0_123, %c332_124, %c0_125] : memref<1x336x128xf32, #tpu.memory_space<vmem>>, vector<1x4x128xf32>
    %306 = vector.shape_cast %305 : vector<1x4x128xf32> to vector<4x128xf32>
    %307 = vector.shape_cast %304 : vector<4x128xf32> to vector<1x4x128xf32>
    tpu.vector_store %arg5[%c0_123, %c332_124, %c0_125], %307 {strides = array<i32>} : memref<1x336x128xf32, #tpu.memory_space<vmem>>, vector<1x4x128xf32>,
    return
  }
  func.func @transform_0(%arg0: i32, %arg1: i32) -> (i32, i32, i32) {
    %c0_i32 = arith.constant 0 : i32
    %c0_i32_0 = arith.constant 0 : i32
    return %arg0, %c0_i32, %arg1 : i32, i32, i32
  }
  func.func @transform_1(%arg0: i32, %arg1: i32) -> (i32, i32, i32) {
    %c0_i32 = arith.constant 0 : i32
    %c0_i32_0 = arith.constant 0 : i32
    %c0_i32_1 = arith.constant 0 : i32
    return %c0_i32, %c0_i32_0, %arg1 : i32, i32, i32
  }
  func.func @transform_2(%arg0: i32, %arg1: i32) -> (i32, i32) {
    %c0_i32 = arith.constant 0 : i32
    %c0_i32_0 = arith.constant 0 : i32
    return %c0_i32, %arg1 : i32, i32
  }
  func.func @transform_3(%arg0: i32, %arg1: i32) -> (i32, i32, i32) {
    %c0_i32 = arith.constant 0 : i32
    %c0_i32_0 = arith.constant 0 : i32
    return %arg0, %c0_i32, %arg1 : i32, i32, i32
  }
}

</mosaic_0001>

<llo_original>
// kernel: tpu_custom_call.1
$region0: #{tpu_custom_call.1}
  #allocation0 [shape = 'u32[]', space=smem, size = 0x4, offset = 0x4, fixed_abs, tag = 'smem constant byte address 0x4 - core index']
  #allocation1 [shape = 'u32[144,128]{1,0:T(1,128)}', space=vmem, size = 0x12000, scoped, tag = 'internal scratch']
  %s0 = inlined_call_operand.hbm [shape: f32[2,336,128], index: 0, kind: input, shape index: {}]
  %s1 = inlined_call_operand.hbm [shape: f32[3,3,128], index: 1, kind: input, shape index: {}]
  %s2 = inlined_call_operand.vmem [shape: f32[1,128], index: 2, kind: input, shape index: {}]
  %s3 = inlined_call_operand.hbm [shape: f32[2,336,128], index: 3, kind: output, shape index: {}]
  %s4 = sld [smem:[#allocation0]]
  $region74: #{tpu_custom_call.1} parent=0
    _
  %s6 = ssub.s32 1, %s4
  %s7 = scalar_select 0, %s6, %s4
  $region1: #{tpu_custom_call.1} parent=0
    #allocation2 [shape = 'u8[344064]{0}', space=vmem, size = 0x54000, scoped, tag = 'input window, operand 0']
    #allocation3 [shape = 's32[2]{0}', space=sflag, size = 0x8, scoped, tag = 'scoped memory for tpu_custom_call.1']
    #allocation4 [shape = 's32[2]{0}', space=sflag, size = 0x8, scoped, tag = 'scoped memory for tpu_custom_call.1']
    #allocation5 [shape = 'u8[6144]{0}', space=vmem, size = 0x1800, scoped, tag = 'input window, operand 1, single buffered']
    #allocation6 [shape = 's32[1]{0}', space=sflag, size = 0x4, scoped, tag = 'scoped memory for tpu_custom_call.1']
    #allocation7 [shape = 'u8[344064]{0}', space=vmem, size = 0x54000, scoped, tag = 'output window, operand 0']
    %8 = vsyncpa [#allocation3], 0
    %s9 = scalar_lea.sflag [#allocation3], 1
    %10 = vsyncpa %s9, 0
    %11 = vsyncpa [#allocation6], 0
    %12 = vsyncpa [#allocation4], 0
    %s13 = scalar_lea.sflag [#allocation4], 1
    %14 = vsyncpa %s13, 0
    loop: start=0, step=1, limit=4
    $region2: #{tpu_custom_call.1} parent=1 // loop_pre_header
      _
    $region3: #{tpu_custom_call.1} parent=1 // loop_header
      %s16 = sphi 0, %s20
      %p17 = scmp.ge.s32.totalorder %s16, 4
      %s23 = sphi 0, %s35
      %s24 = sphi 0, %s31
      %s25 = sphi 0, %s23
      %s26 = sphi 0, %s24
      %s27 = sphi 0, %s25
      %s28 = sphi 0, %s26
      %s40 = sphi 0, %s42
      %s43 = sphi 0, %s40
      %s44 = sphi 0, %s43
      %s60 = sphi 0, %s44
      %s66 = sphi 0, %s68
      %s69 = sphi 0, %s66
      %s70 = sphi 0, %s69
      %s86 = sphi 0, %s70
      %s92 = sphi 0, %s94
      %s95 = sphi 0, %s92
      %s96 = sphi 0, %s95
      %s112 = sphi 0, %s96
      %s120 = sphi 0, %s122
      %s123 = sphi 0, %s120
      %s124 = sphi 0, %s123
      %s140 = sphi 0, %s124
    $region4: #{tpu_custom_call.1} parent=1 // loop_header_branch
      %19 = sbr.rel (%p17) target = $region8
    $region5: #{tpu_custom_call.1} parent=1 // loop_body
      %s21 = ssub.s32 %s16, 1
      %s22 = ssub.s32 %s16, 2
      %s29 = sadd.s32 1, %s24
      %p30 = scmp.ge.s32.totalorder %s29, 1
      %s31 = scalar_select %p30, 0, %s29
      %s32 = sadd.s32 1, %s23
      %s33 = scalar_select %p30, %s32, %s23
      %p34 = scmp.ge.s32.totalorder %s33, 2
      %s35 = scalar_select %p34, 0, %s33
      %s36 = ssub.s32 %s23, %s35
      %s37 = ssub.s32 %s24, %s31
      %s38 = sor.u32 %s36, %s37
      %p39 = scmp.eq.s32.totalorder %s38, 0
      %s41 = sadd.s32 %s40, 1
      %s42 = scalar_select %p39, %s40, %s41
      %p45 = pneg %p39
      %p46 = scmp.eq.s32.totalorder %s16, 1
      %p47 = por %p45, %p46
      %p48 = scmp.ne.s32.totalorder %s40, %s43
      %p49 = scmp.eq.s32.totalorder %s16, 0
      %p50 = por %p48, %p49
      %p51 = scmp.ne.s32.totalorder %s40, %s43
      %p52 = scmp.eq.s32.totalorder %s21, 1
      %p53 = por %p51, %p52
      %p54 = scmp.ne.s32.totalorder %s43, %s44
      %p55 = scmp.eq.s32.totalorder %s21, 0
      %p56 = por %p54, %p55
      %p57 = scmp.ne.s32.totalorder %s43, %s44
      %p58 = scmp.eq.s32.totalorder %s22, 1
      %p59 = por %p57, %p58
      %p61 = scmp.ne.s32.totalorder %s44, %s60
      %p62 = scmp.eq.s32.totalorder %s22, 0
      %p63 = por %p61, %p62
      %s64 = ssub.s32 %s24, %s31
      %p65 = scmp.eq.s32.totalorder %s64, 0
      %s67 = sadd.s32 %s66, 1
      %s68 = scalar_select %p65, %s66, %s67
      %p71 = pneg %p65
      %p72 = scmp.eq.s32.totalorder %s16, 1
      %p73 = por %p71, %p72
      %p74 = scmp.ne.s32.totalorder %s66, %s69
      %p75 = scmp.eq.s32.totalorder %s16, 0
      %p76 = por %p74, %p75
      %p77 = scmp.ne.s32.totalorder %s66, %s69
      %p78 = scmp.eq.s32.totalorder %s21, 1
      %p79 = por %p77, %p78
      %p80 = scmp.ne.s32.totalorder %s69, %s70
      %p81 = scmp.eq.s32.totalorder %s21, 0
      %p82 = por %p80, %p81
      %p83 = scmp.ne.s32.totalorder %s69, %s70
      %p84 = scmp.eq.s32.totalorder %s22, 1
      %p85 = por %p83, %p84
      %p87 = scmp.ne.s32.totalorder %s70, %s86
      %p88 = scmp.eq.s32.totalorder %s22, 0
      %p89 = por %p87, %p88
      %s90 = ssub.s32 %s24, %s31
      %p91 = scmp.eq.s32.totalorder %s90, 0
      %s93 = sadd.s32 %s92, 1
      %s94 = scalar_select %p91, %s92, %s93
      %p97 = pneg %p91
      %p98 = scmp.eq.s32.totalorder %s16, 1
      %p99 = por %p97, %p98
      %p100 = scmp.ne.s32.totalorder %s92, %s95
      %p101 = scmp.eq.s32.totalorder %s16, 0
      %p102 = por %p100, %p101
      %p103 = scmp.ne.s32.totalorder %s92, %s95
      %p104 = scmp.eq.s32.totalorder %s21, 1
      %p105 = por %p103, %p104
      %p106 = scmp.ne.s32.totalorder %s95, %s96
      %p107 = scmp.eq.s32.totalorder %s21, 0
      %p108 = por %p106, %p107
      %p109 = scmp.ne.s32.totalorder %s95, %s96
      %p110 = scmp.eq.s32.totalorder %s22, 1
      %p111 = por %p109, %p110
      %p113 = scmp.ne.s32.totalorder %s96, %s112
      %p114 = scmp.eq.s32.totalorder %s22, 0
      %p115 = por %p113, %p114
      %s116 = ssub.s32 %s23, %s35
      %s117 = ssub.s32 %s24, %s31
      %s118 = sor.u32 %s116, %s117
      %p119 = scmp.eq.s32.totalorder %s118, 0
      %s121 = sadd.s32 %s120, 1
      %s122 = scalar_select %p119, %s120, %s121
      %p125 = pneg %p119
      %p126 = scmp.eq.s32.totalorder %s16, 1
      %p127 = por %p125, %p126
      %p128 = scmp.ne.s32.totalorder %s120, %s123
      %p129 = scmp.eq.s32.totalorder %s16, 0
      %p130 = por %p128, %p129
      %p131 = scmp.ne.s32.totalorder %s120, %s123
      %p132 = scmp.eq.s32.totalorder %s21, 1
      %p133 = por %p131, %p132
      %p134 = scmp.ne.s32.totalorder %s123, %s124
      %p135 = scmp.eq.s32.totalorder %s21, 0
      %p136 = por %p134, %p135
      %p137 = scmp.ne.s32.totalorder %s123, %s124
      %p138 = scmp.eq.s32.totalorder %s22, 1
      %p139 = por %p137, %p138
      %p141 = scmp.ne.s32.totalorder %s124, %s140
      %p142 = scmp.eq.s32.totalorder %s22, 0
      %p143 = por %p141, %p142
      %p144 = scmp.le.s32.totalorder 1, %s16
      %p145 = scmp.lt.s32.totalorder %s16, 3
      %p146 = pnand %p144, %p145
      %p147 = pneg %p146
      // Predicated region
      $region9: #{tpu_custom_call.1} parent=5 // pred_check
        _
      $region10: #{tpu_custom_call.1} parent=5 // pred_check_branch
        %149 = sbr.rel (%p146) target = $region12
      $region11: #{tpu_custom_call.1} parent=5 // pred_region
        %s150 = ssub.s32 %s16, 1
        // Predicated region
        $region13: #{tpu_custom_call.1} parent=11 // pred_check
          %p151 = pneg %p82
        $region14: #{tpu_custom_call.1} parent=11 // pred_check_branch
          %153 = sbr.rel (%p151) target = $region16
        $region15: #{tpu_custom_call.1} parent=11 // pred_region
          %s155 = ssub.s32 192, 192
          %156 = vsyncadd [#allocation6], %s155
          %s157 = smul.addr %s26, 64
          %s158 = scalar_lea.hbm %s1, %s157
          %s159 = sshll.u32 [#allocation5], 4
          %s160 = int_to_ptr.vmem [resolvable:$true] %s159
          %165 = dma.hbm_to_vmem [thread:$0]  %s158, 192, %s160, [#allocation6], 64, 64, 4
        $region16: #{tpu_custom_call.1} parent=11 // pred_fallthru
          _
        // Predicated region
        $region17: #{tpu_custom_call.1} parent=11 // pred_check
          %p166 = pneg %p108
        $region18: #{tpu_custom_call.1} parent=11 // pred_check_branch
          %168 = sbr.rel (%p166) target = $region20
        $region19: #{tpu_custom_call.1} parent=11 // pred_region
          %p169 = scmp.lt.s32.totalorder %s26, 0
          %s170 = scalar_select %p169, %s26, 0
          %s171 = scalar_lea.vmem %s2, %s170
        $region20: #{tpu_custom_call.1} parent=11 // pred_fallthru
          _
      $region12: #{tpu_custom_call.1} parent=5 // pred_fallthru
        _
      %p172 = scmp.lt.s32.totalorder %s16, 2
      // Predicated region
      $region21: #{tpu_custom_call.1} parent=5 // pred_check
        %p173 = pneg %p172
      $region22: #{tpu_custom_call.1} parent=5 // pred_check_branch
        %175 = sbr.rel (%p173) target = $region24
      $region23: #{tpu_custom_call.1} parent=5 // pred_region
        // Predicated region
        $region25: #{tpu_custom_call.1} parent=23 // pred_check
          %p176 = pneg %p50
        $region26: #{tpu_custom_call.1} parent=23 // pred_check_branch
          %178 = sbr.rel (%p176) target = $region28
        $region27: #{tpu_custom_call.1} parent=23 // pred_region
          %s179 = sand.u32 %s40, 1
          %s180 = scalar_lea.sflag [#allocation3], %s179
          %s181 = sand.u32 %s40, 1
          %s182 = smul.addr %s181, 336
          %s183 = scalar_lea.vmem [#allocation2], %s182
          %s185 = ssub.s32 5376, 5376
          %186 = vsyncadd %s180, %s185
          %s187 = smul.addr %s23, 42
          %s188 = sadd.s32 %s24, %s187
          %s189 = smul.addr %s188, 128
          %s190 = scalar_lea.hbm %s0, %s189
          %s191 = sshll.u32 %s183, 4
          %s192 = int_to_ptr.vmem [resolvable:$true] %s191
          %197 = dma.hbm_to_vmem [thread:$0]  %s190, 5376, %s192, %s180, 128, 128, 8
        $region28: #{tpu_custom_call.1} parent=23 // pred_fallthru
          _
      $region24: #{tpu_custom_call.1} parent=5 // pred_fallthru
        _
      %p198 = scmp.le.s32.totalorder 1, %s16
      %p199 = scmp.lt.s32.totalorder %s16, 3
      %p200 = pnand %p198, %p199
      %p201 = pneg %p200
      // Predicated region
      $region29: #{tpu_custom_call.1} parent=5 // pred_check
        _
      $region30: #{tpu_custom_call.1} parent=5 // pred_check_branch
        %203 = sbr.rel (%p200) target = $region32
      $region31: #{tpu_custom_call.1} parent=5 // pred_region
        %s204 = ssub.s32 %s16, 1
        %s205 = sand.u32 %s43, 1
        %s206 = scalar_lea.sflag [#allocation3], %s205
        %s207 = sand.u32 %s43, 1
        %s208 = smul.addr %s207, 336
        %s209 = scalar_lea.vmem [#allocation2], %s208
        // Predicated region
        $region33: #{tpu_custom_call.1} parent=31 // pred_check
          %p210 = pneg %p56
        $region34: #{tpu_custom_call.1} parent=31 // pred_check_branch
          %212 = sbr.rel (%p210) target = $region36
        $region35: #{tpu_custom_call.1} parent=31 // pred_region
          %213 = dma.done %s206, 5376
        $region36: #{tpu_custom_call.1} parent=31 // pred_fallthru
          _
        // Predicated region
        $region37: #{tpu_custom_call.1} parent=31 // pred_check
          %p214 = pneg %p82
        $region38: #{tpu_custom_call.1} parent=31 // pred_check_branch
          %216 = sbr.rel (%p214) target = $region40
        $region39: #{tpu_custom_call.1} parent=31 // pred_region
          %217 = dma.done [#allocation6], 192
        $region40: #{tpu_custom_call.1} parent=31 // pred_fallthru
          _
        %s218 = sand.u32 %s43, 1
        %s219 = scalar_lea.sflag [#allocation3], %s218
        %s220 = sand.u32 %s43, 1
        %s221 = smul.addr %s220, 336
        %s222 = scalar_lea.vmem [#allocation2], %s221
        %p223 = pneg %p56
        %p224 = pneg %p53
        %p225 = pneg %p82
        %p226 = pneg %p79
        %p227 = scmp.lt.s32.totalorder %s26, 0
        %s228 = scalar_select %p227, %s26, 0
        %s229 = scalar_lea.vmem %s2, %s228
        %p230 = pneg %p108
        %p231 = pneg %p105
        %p232 = pneg %p136
        %p233 = pneg %p133
        %s234 = sand.u32 %s123, 1
        %s235 = scalar_lea.sflag [#allocation4], %s234
        %s236 = sand.u32 %s123, 1
        %s237 = smul.addr %s236, 336
        %s238 = scalar_lea.vmem [#allocation7], %s237
        %p239 = scmp.lt.s32.totalorder %s26, 0
        %s240 = scalar_select %p239, %s26, 0
        %s241 = scalar_lea.vmem %s2, %s240
        %v242 = vld [vmem:[#allocation5] sm:$0x1]
        %v243 = vld [vmem:[#allocation5 + $0x1] sm:$0x1]
        %v244 = vld [vmem:[#allocation5 + $0x2] sm:$0x1]
        %s245 = scalar_lea.vmem [#allocation5], 4
        %v246 = vld [vmem:[%s245] sm:$0x1]
        %v247 = vld [vmem:[%s245 + $0x1] sm:$0x1]
        %v248 = vld [vmem:[%s245 + $0x2] sm:$0x1]
        %s249 = scalar_lea.vmem [#allocation5], 8
        %v250 = vld [vmem:[%s249] sm:$0x1]
        %v251 = vld [vmem:[%s249 + $0x1] sm:$0x1]
        %v252 = vld [vmem:[%s249 + $0x2] sm:$0x1]
        %v253 = vld [vmem:[%s241] sm:$0x1]
        %v254 = vlaneseq
        %v255 = vshrl.u32 %v254, 7
        %v256 = vadd.s32 %v255, 8
        %vm257 = vcmp.gt.s32.totalorder %v255, 0
        %vm258 = vcmp.gt.s32.totalorder %v256, 0
        %vm259 = vcmp.lt.s32.totalorder %v255, 15
        %vm260 = vcmp.lt.s32.totalorder %v256, 15
        %v261 = vld [vmem:[%s209] sm:$0xff]
        %v262 = vld [vmem:[%s209 + $0x8] sm:$0xff]
        %v263 = vlaneseq
        %v264 = vshrl.u32 %v263, 7
        %v265 = vsub.s32 0, %v264
        %v266 = vrot.slane %v247, %v265
        %v267 = vmul.f32 %v261, %v266
        %v268 = vmul.f32 %v262, %v266
        %v269 = vrot.slane %v261, 7
        %v270 = vrot.slane %v262, 7
        %vm271 = vcmp.lt.s32.totalorder %v255, 1
        %v272 = vsel %vm271, %v269, %v270
        %v273 = vsel %vm271, %v270, %v269
        %v274 = vsel %vm257, %v273, 0.0
        %v275 = vsel %vm258, %v272, 0.0
        %v276 = vlaneseq
        %v277 = vshrl.u32 %v276, 7
        %v278 = vsub.s32 0, %v277
        %v279 = vrot.slane %v246, %v278
        %v280 = vmul.f32 %v274, %v279
        %v281 = vmul.f32 %v275, %v279
        %v282 = vadd.f32 %v267, %v280
        %v283 = vadd.f32 %v268, %v281
        %v284 = vrot.slane %v261, 1
        %v285 = vrot.slane %v262, 1
        %vm286 = vcmp.lt.s32.totalorder %v255, 7
        %v287 = vsel %vm286, %v284, %v285
        %v288 = vsel %vm286, %v285, %v284
        %v289 = vsel %vm259, %v287, 0.0
        %v290 = vsel %vm260, %v288, 0.0
        %v291 = vlaneseq
        %v292 = vshrl.u32 %v291, 7
        %v293 = vsub.s32 0, %v292
        %v294 = vrot.slane %v248, %v293
        %v295 = vmul.f32 %v289, %v294
        %v296 = vmul.f32 %v290, %v294
        %v297 = vadd.f32 %v282, %v295
        %v298 = vadd.f32 %v283, %v296
        %v299 = vld [vmem:[%s209 + $0x10] sm:$0xff]
        %v300 = vld [vmem:[%s209 + $0x18] sm:$0xff]
        %v301 = vlaneseq
        %v302 = vshrl.u32 %v301, 7
        %v303 = vsub.s32 0, %v302
        %v304 = vrot.slane %v251, %v303
        %v305 = vmul.f32 %v299, %v304
        %v306 = vmul.f32 %v300, %v304
        %v307 = vadd.f32 %v297, %v305
        %v308 = vadd.f32 %v298, %v306
        %v309 = vrot.slane %v299, 7
        %v310 = vrot.slane %v300, 7
        %v311 = vsel %vm271, %v309, %v310
        %v312 = vsel %vm271, %v310, %v309
        %v313 = vsel %vm257, %v312, 0.0
        %v314 = vsel %vm258, %v311, 0.0
        %v315 = vlaneseq
        %v316 = vshrl.u32 %v315, 7
        %v317 = vsub.s32 0, %v316
        %v318 = vrot.slane %v250, %v317
        %v319 = vmul.f32 %v313, %v318
        %v320 = vmul.f32 %v314, %v318
        %v321 = vadd.f32 %v307, %v319
        %v322 = vadd.f32 %v308, %v320
        %v323 = vrot.slane %v299, 1
        %v324 = vrot.slane %v300, 1
        %v325 = vsel %vm286, %v323, %v324
        %v326 = vsel %vm286, %v324, %v323
        %v327 = vsel %vm259, %v325, 0.0
        %v328 = vsel %vm260, %v326, 0.0
        %v329 = vlaneseq
        %v330 = vshrl.u32 %v329, 7
        %v331 = vsub.s32 0, %v330
        %v332 = vrot.slane %v252, %v331
        %v333 = vmul.f32 %v327, %v332
        %v334 = vmul.f32 %v328, %v332
        %v335 = vadd.f32 %v321, %v333
        %v336 = vadd.f32 %v322, %v334
        %v338 = vlaneseq
        %v339 = vshrl.u32 %v338, 7
        %v340 = vsub.s32 0, %v339
        %v341 = vrot.slane %v253, %v340
        %v343 = vadd.f32 %v335, %v341
        %v344 = vadd.f32 %v336, %v341
        %345 = vst [vmem:[%s238] sm:$0xff] %v343
        %346 = vst [vmem:[%s238 + $0x8] sm:$0xff] %v344
        loop: start=1, step=1, limit=15
        $region41: #{tpu_custom_call.1} parent=31 // loop_pre_header
          _
        $region42: #{tpu_custom_call.1} parent=31 // loop_header
          %s348 = sphi 1, %s352
          %p349 = scmp.ge.s32.totalorder %s348, 15
        $region43: #{tpu_custom_call.1} parent=31 // loop_header_branch
          %351 = sbr.rel (%p349) target = $region47
        $region44: #{tpu_custom_call.1} parent=31 // loop_body
          %s353 = ssub.s32 %s348, 1
          %s354 = smul.u32 %s353, 16
          %s355 = scalar_lea.vmem %s209, %s354 [#allocation2]
          %v356 = vld [vmem:[%s355] sm:$0xff]
          %v357 = vld [vmem:[%s355 + $0x8] sm:$0xff]
          %v358 = vlaneseq
          %v359 = vshrl.u32 %v358, 7
          %v360 = vsub.s32 0, %v359
          %v361 = vrot.slane %v243, %v360
          %v362 = vmul.f32 %v356, %v361
          %v363 = vmul.f32 %v357, %v361
          %v364 = vrot.slane %v356, 7
          %v365 = vrot.slane %v357, 7
          %v366 = vsel %vm271, %v364, %v365
          %v367 = vsel %vm271, %v365, %v364
          %v368 = vsel %vm257, %v367, 0.0
          %v369 = vsel %vm258, %v366, 0.0
          %v370 = vlaneseq
          %v371 = vshrl.u32 %v370, 7
          %v372 = vsub.s32 0, %v371
          %v373 = vrot.slane %v242, %v372
          %v374 = vmul.f32 %v368, %v373
          %v375 = vmul.f32 %v369, %v373
          %v376 = vadd.f32 %v362, %v374
          %v377 = vadd.f32 %v363, %v375
          %v378 = vrot.slane %v356, 1
          %v379 = vrot.slane %v357, 1
          %v380 = vsel %vm286, %v378, %v379
          %v381 = vsel %vm286, %v379, %v378
          %v382 = vsel %vm259, %v380, 0.0
          %v383 = vsel %vm260, %v381, 0.0
          %v384 = vlaneseq
          %v385 = vshrl.u32 %v384, 7
          %v386 = vsub.s32 0, %v385
          %v387 = vrot.slane %v244, %v386
          %v388 = vmul.f32 %v382, %v387
          %v389 = vmul.f32 %v383, %v387
          %v390 = vadd.f32 %v376, %v388
          %v391 = vadd.f32 %v377, %v389
          %s392 = smul.u32 %s348, 16
          %s393 = scalar_lea.vmem %s209, %s392 [#allocation2]
          %v394 = vld [vmem:[%s393] sm:$0xff]
          %v395 = vld [vmem:[%s393 + $0x8] sm:$0xff]
          %v396 = vmul.f32 %v394, %v266
          %v397 = vmul.f32 %v395, %v266
          %v398 = vadd.f32 %v390, %v396
          %v399 = vadd.f32 %v391, %v397
          %v400 = vrot.slane %v394, 7
          %v401 = vrot.slane %v395, 7
          %v402 = vsel %vm271, %v400, %v401
          %v403 = vsel %vm271, %v401, %v400
          %v404 = vsel %vm257, %v403, 0.0
          %v405 = vsel %vm258, %v402, 0.0
          %v406 = vmul.f32 %v404, %v279
          %v407 = vmul.f32 %v405, %v279
          %v408 = vadd.f32 %v398, %v406
          %v409 = vadd.f32 %v399, %v407
          %v410 = vrot.slane %v394, 1
          %v411 = vrot.slane %v395, 1
          %v412 = vsel %vm286, %v410, %v411
          %v413 = vsel %vm286, %v411, %v410
          %v414 = vsel %vm259, %v412, 0.0
          %v415 = vsel %vm260, %v413, 0.0
          %v416 = vmul.f32 %v414, %v294
          %v417 = vmul.f32 %v415, %v294
          %v418 = vadd.f32 %v408, %v416
          %v419 = vadd.f32 %v409, %v417
          %s420 = sadd.s32 %s348, 1
          %s421 = smul.u32 %s420, 16
          %s422 = scalar_lea.vmem %s209, %s421 [#allocation2]
          %v423 = vld [vmem:[%s422] sm:$0xff]
          %v424 = vld [vmem:[%s422 + $0x8] sm:$0xff]
          %v425 = vmul.f32 %v423, %v304
          %v426 = vmul.f32 %v424, %v304
          %v427 = vadd.f32 %v418, %v425
          %v428 = vadd.f32 %v419, %v426
          %v429 = vrot.slane %v423, 7
          %v430 = vrot.slane %v424, 7
          %v431 = vsel %vm271, %v429, %v430
          %v432 = vsel %vm271, %v430, %v429
          %v433 = vsel %vm257, %v432, 0.0
          %v434 = vsel %vm258, %v431, 0.0
          %v435 = vmul.f32 %v433, %v318
          %v436 = vmul.f32 %v434, %v318
          %v437 = vadd.f32 %v427, %v435
          %v438 = vadd.f32 %v428, %v436
          %v439 = vrot.slane %v423, 1
          %v440 = vrot.slane %v424, 1
          %v441 = vsel %vm286, %v439, %v440
          %v442 = vsel %vm286, %v440, %v439
          %v443 = vsel %vm259, %v441, 0.0
          %v444 = vsel %vm260, %v442, 0.0
          %v445 = vmul.f32 %v443, %v332
          %v446 = vmul.f32 %v444, %v332
          %v447 = vadd.f32 %v437, %v445
          %v448 = vadd.f32 %v438, %v446
          %v449 = vadd.f32 %v447, %v341
          %v450 = vadd.f32 %v448, %v341
          %s451 = scalar_lea.vmem %s238, %s392 [#allocation7]
          %452 = vst [vmem:[%s451] sm:$0xff] %v449
          %453 = vst [vmem:[%s451 + $0x8] sm:$0xff] %v450
        $region45: #{tpu_custom_call.1} parent=31 // loop_footer
          %s352 = sadd.s32 1, %s348
        $region46: #{tpu_custom_call.1} parent=31 // loop_footer_branch
          %347 = sbr.rel target = $region42
        $region47: #{tpu_custom_call.1} parent=31 // loop_exit
          _
        %v454 = vld [vmem:[%s209 + $0xe0] sm:$0xff]
        %v455 = vld [vmem:[%s209 + $0xe8] sm:$0xff]
        %v456 = vlaneseq
        %v457 = vshrl.u32 %v456, 7
        %v458 = vsub.s32 0, %v457
        %v459 = vrot.slane %v243, %v458
        %v460 = vmul.f32 %v454, %v459
        %v461 = vmul.f32 %v455, %v459
        %v462 = vrot.slane %v454, 7
        %v463 = vrot.slane %v455, 7
        %v464 = vsel %vm271, %v462, %v463
        %v465 = vsel %vm271, %v463, %v462
        %v466 = vsel %vm257, %v465, 0.0
        %v467 = vsel %vm258, %v464, 0.0
        %v468 = vlaneseq
        %v469 = vshrl.u32 %v468, 7
        %v470 = vsub.s32 0, %v469
        %v471 = vrot.slane %v242, %v470
        %v472 = vmul.f32 %v466, %v471
        %v473 = vmul.f32 %v467, %v471
        %v474 = vadd.f32 %v460, %v472
        %v475 = vadd.f32 %v461, %v473
        %v476 = vrot.slane %v454, 1
        %v477 = vrot.slane %v455, 1
        %v478 = vsel %vm286, %v476, %v477
        %v479 = vsel %vm286, %v477, %v476
        %v480 = vsel %vm259, %v478, 0.0
        %v481 = vsel %vm260, %v479, 0.0
        %v482 = vlaneseq
        %v483 = vshrl.u32 %v482, 7
        %v484 = vsub.s32 0, %v483
        %v485 = vrot.slane %v244, %v484
        %v486 = vmul.f32 %v480, %v485
        %v487 = vmul.f32 %v481, %v485
        %v488 = vadd.f32 %v474, %v486
        %v489 = vadd.f32 %v475, %v487
        %v490 = vld [vmem:[%s209 + $0xf0] sm:$0xff]
        %v491 = vld [vmem:[%s209 + $0xf8] sm:$0xff]
        %v492 = vmul.f32 %v490, %v266
        %v493 = vmul.f32 %v491, %v266
        %v494 = vadd.f32 %v488, %v492
        %v495 = vadd.f32 %v489, %v493
        %v496 = vrot.slane %v490, 7
        %v497 = vrot.slane %v491, 7
        %v498 = vsel %vm271, %v496, %v497
        %v499 = vsel %vm271, %v497, %v496
        %v500 = vsel %vm257, %v499, 0.0
        %v501 = vsel %vm258, %v498, 0.0
        %v502 = vmul.f32 %v500, %v279
        %v503 = vmul.f32 %v501, %v279
        %v504 = vadd.f32 %v494, %v502
        %v505 = vadd.f32 %v495, %v503
        %v506 = vrot.slane %v490, 1
        %v507 = vrot.slane %v491, 1
        %v508 = vsel %vm286, %v506, %v507
        %v509 = vsel %vm286, %v507, %v506
        %v510 = vsel %vm259, %v508, 0.0
        %v511 = vsel %vm260, %v509, 0.0
        %v512 = vmul.f32 %v510, %v294
        %v513 = vmul.f32 %v511, %v294
        %v514 = vadd.f32 %v504, %v512
        %v515 = vadd.f32 %v505, %v513
        %v516 = vadd.f32 %v514, %v341
        %v517 = vadd.f32 %v515, %v341
        %518 = vst [vmem:[%s238 + $0xf0] sm:$0xff] %v516
        %519 = vst [vmem:[%s238 + $0xf8] sm:$0xff] %v517
        %v520 = vld [vmem:[%s209 + $0x100] sm:$0xff]
        %v521 = vmul.f32 %v520, %v266
        %v522 = vrot.slane %v520, 7
        %v523 = vsel %vm257, %v522, 0.0
        %v524 = vmul.f32 %v523, %v279
        %v525 = vadd.f32 %v521, %v524
        %v526 = vrot.slane %v520, 1
        %v527 = vsel %vm286, %v526, 0.0
        %v528 = vmul.f32 %v527, %v294
        %v529 = vadd.f32 %v525, %v528
        %v530 = vld [vmem:[%s209 + $0x108] sm:$0xff]
        %v531 = vmul.f32 %v530, %v304
        %v532 = vadd.f32 %v529, %v531
        %v533 = vrot.slane %v530, 7
        %v534 = vsel %vm257, %v533, 0.0
        %v535 = vmul.f32 %v534, %v318
        %v536 = vadd.f32 %v532, %v535
        %v537 = vrot.slane %v530, 1
        %v538 = vsel %vm286, %v537, 0.0
        %v539 = vmul.f32 %v538, %v332
        %v540 = vadd.f32 %v536, %v539
        %v541 = vadd.f32 %v540, %v341
        %542 = vst [vmem:[%s238 + $0x100] sm:$0xff] %v541
        loop: start=1, step=1, limit=7
        $region48: #{tpu_custom_call.1} parent=31 // loop_pre_header
          _
        $region49: #{tpu_custom_call.1} parent=31 // loop_header
          %s544 = sphi 1, %s548
          %p545 = scmp.ge.s32.totalorder %s544, 7
        $region50: #{tpu_custom_call.1} parent=31 // loop_header_branch
          %547 = sbr.rel (%p545) target = $region54
        $region51: #{tpu_custom_call.1} parent=31 // loop_body
          %s549 = ssub.s32 %s544, 1
          %s550 = smul.u32 %s549, 8
          %s551 = sadd.s32 %s550, 256
          %s552 = scalar_lea.vmem %s209, %s551 [#allocation2]
          %v553 = vld [vmem:[%s552] sm:$0xff]
          %v554 = vmul.f32 %v553, %v459
          %v555 = vrot.slane %v553, 7
          %v556 = vsel %vm257, %v555, 0.0
          %v557 = vmul.f32 %v556, %v471
          %v558 = vadd.f32 %v554, %v557
          %v559 = vrot.slane %v553, 1
          %v560 = vsel %vm286, %v559, 0.0
          %v561 = vmul.f32 %v560, %v485
          %v562 = vadd.f32 %v558, %v561
          %s563 = smul.u32 %s544, 8
          %s564 = sadd.s32 %s563, 256
          %s565 = scalar_lea.vmem %s209, %s564 [#allocation2]
          %v566 = vld [vmem:[%s565] sm:$0xff]
          %v567 = vmul.f32 %v566, %v266
          %v568 = vadd.f32 %v562, %v567
          %v569 = vrot.slane %v566, 7
          %v570 = vsel %vm257, %v569, 0.0
          %v571 = vmul.f32 %v570, %v279
          %v572 = vadd.f32 %v568, %v571
          %v573 = vrot.slane %v566, 1
          %v574 = vsel %vm286, %v573, 0.0
          %v575 = vmul.f32 %v574, %v294
          %v576 = vadd.f32 %v572, %v575
          %s577 = sadd.s32 %s544, 1
          %s578 = smul.u32 %s577, 8
          %s579 = sadd.s32 %s578, 256
          %s580 = scalar_lea.vmem %s209, %s579 [#allocation2]
          %v581 = vld [vmem:[%s580] sm:$0xff]
          %v582 = vmul.f32 %v581, %v304
          %v583 = vadd.f32 %v576, %v582
          %v584 = vrot.slane %v581, 7
          %v585 = vsel %vm257, %v584, 0.0
          %v586 = vmul.f32 %v585, %v318
          %v587 = vadd.f32 %v583, %v586
          %v588 = vrot.slane %v581, 1
          %v589 = vsel %vm286, %v588, 0.0
          %v590 = vmul.f32 %v589, %v332
          %v591 = vadd.f32 %v587, %v590
          %v592 = vadd.f32 %v591, %v341
          %s593 = scalar_lea.vmem %s238, %s564 [#allocation7]
          %594 = vst [vmem:[%s593] sm:$0xff] %v592
        $region52: #{tpu_custom_call.1} parent=31 // loop_footer
          %s548 = sadd.s32 1, %s544
        $region53: #{tpu_custom_call.1} parent=31 // loop_footer_branch
          %543 = sbr.rel target = $region49
        $region54: #{tpu_custom_call.1} parent=31 // loop_exit
          _
        %v595 = vld [vmem:[%s209 + $0x130] sm:$0xff]
        %v596 = vmul.f32 %v595, %v459
        %v597 = vrot.slane %v595, 7
        %v598 = vsel %vm257, %v597, 0.0
        %v599 = vmul.f32 %v598, %v471
        %v600 = vadd.f32 %v596, %v599
        %v601 = vrot.slane %v595, 1
        %v602 = vsel %vm286, %v601, 0.0
        %v603 = vmul.f32 %v602, %v485
        %v604 = vadd.f32 %v600, %v603
        %v605 = vld [vmem:[%s209 + $0x138] sm:$0xff]
        %v606 = vmul.f32 %v605, %v266
        %v607 = vadd.f32 %v604, %v606
        %v608 = vrot.slane %v605, 7
        %v609 = vsel %vm257, %v608, 0.0
        %v610 = vmul.f32 %v609, %v279
        %v611 = vadd.f32 %v607, %v610
        %v612 = vrot.slane %v605, 1
        %v613 = vsel %vm286, %v612, 0.0
        %v614 = vmul.f32 %v613, %v294
        %v615 = vadd.f32 %v611, %v614
        %v616 = vadd.f32 %v615, %v341
        %617 = vst [vmem:[%s238 + $0x138] sm:$0xff] %v616
        %vm618 = vcmp.lt.s32.totalorder %v255, 3
        %v619 = vld [vmem:[%s209 + $0x140] sm:$0xf]
        %v620 = vmul.f32 %v619, %v266
        %vm621 = vcmask 1047556
        %v622 = vrot.slane %v619, 4
        %v623 = vsel %vm621, %v622, %v619
        %v624 = vrot.slane %v623, 4
        %v625 = vsel %vm621, %v624, %v619
        %v627 = vrot.slane %v625, 3
        %v629 = vsel %vm257, %v627, 0.0
        %v630 = vmul.f32 %v629, %v279
        %v631 = vadd.f32 %v620, %v630
        %v632 = vrot.slane %v625, 1
        %v634 = vsel %vm618, %v632, 0.0
        %v635 = vmul.f32 %v634, %v294
        %v636 = vadd.f32 %v631, %v635
        %v637 = vld [vmem:[%s209 + $0x144] sm:$0xf]
        %v638 = vmul.f32 %v637, %v304
        %v639 = vadd.f32 %v636, %v638
        %v640 = vrot.slane %v637, 4
        %v641 = vsel %vm621, %v640, %v637
        %v642 = vrot.slane %v641, 4
        %v643 = vsel %vm621, %v642, %v637
        %v645 = vrot.slane %v643, 3
        %v647 = vsel %vm257, %v645, 0.0
        %v648 = vmul.f32 %v647, %v318
        %v649 = vadd.f32 %v639, %v648
        %v650 = vrot.slane %v643, 1
        %v652 = vsel %vm618, %v650, 0.0
        %v653 = vmul.f32 %v652, %v332
        %v654 = vadd.f32 %v649, %v653
        %v655 = vadd.f32 %v654, %v341
        %656 = vst [vmem:[%s238 + $0x140] sm:$0xf] %v655
        loop: start=1, step=1, limit=3
        $region55: #{tpu_custom_call.1} parent=31 // loop_pre_header
          _
        $region56: #{tpu_custom_call.1} parent=31 // loop_header
          %s658 = sphi 1, %s662
          %p659 = scmp.ge.s32.totalorder %s658, 3
        $region57: #{tpu_custom_call.1} parent=31 // loop_header_branch
          %661 = sbr.rel (%p659) target = $region61
        $region58: #{tpu_custom_call.1} parent=31 // loop_body
          %s663 = ssub.s32 %s658, 1
          %s664 = smul.u32 %s663, 4
          %s665 = sadd.s32 %s664, 320
          %s666 = scalar_lea.vmem %s209, %s665 [#allocation2]
          %v667 = vld [vmem:[%s666] sm:$0xf]
          %v668 = vmul.f32 %v667, %v459
          %v669 = vrot.slane %v667, 4
          %v670 = vsel %vm621, %v669, %v667
          %v671 = vrot.slane %v670, 4
          %v672 = vsel %vm621, %v671, %v667
          %v674 = vrot.slane %v672, 3
          %v676 = vsel %vm257, %v674, 0.0
          %v677 = vmul.f32 %v676, %v471
          %v678 = vadd.f32 %v668, %v677
          %v679 = vrot.slane %v672, 1
          %v681 = vsel %vm618, %v679, 0.0
          %v682 = vmul.f32 %v681, %v485
          %v683 = vadd.f32 %v678, %v682
          %s684 = smul.u32 %s658, 4
          %s685 = sadd.s32 %s684, 320
          %s686 = scalar_lea.vmem %s209, %s685 [#allocation2]
          %v687 = vld [vmem:[%s686] sm:$0xf]
          %v688 = vmul.f32 %v687, %v266
          %v689 = vadd.f32 %v683, %v688
          %v690 = vrot.slane %v687, 4
          %v691 = vsel %vm621, %v690, %v687
          %v692 = vrot.slane %v691, 4
          %v693 = vsel %vm621, %v692, %v687
          %v695 = vrot.slane %v693, 3
          %v697 = vsel %vm257, %v695, 0.0
          %v698 = vmul.f32 %v697, %v279
          %v699 = vadd.f32 %v689, %v698
          %v700 = vrot.slane %v693, 1
          %v702 = vsel %vm618, %v700, 0.0
          %v703 = vmul.f32 %v702, %v294
          %v704 = vadd.f32 %v699, %v703
          %s705 = sadd.s32 %s658, 1
          %s706 = smul.u32 %s705, 4
          %s707 = sadd.s32 %s706, 320
          %s708 = scalar_lea.vmem %s209, %s707 [#allocation2]
          %v709 = vld [vmem:[%s708] sm:$0xf]
          %v710 = vmul.f32 %v709, %v304
          %v711 = vadd.f32 %v704, %v710
          %v712 = vrot.slane %v709, 4
          %v713 = vsel %vm621, %v712, %v709
          %v714 = vrot.slane %v713, 4
          %v715 = vsel %vm621, %v714, %v709
          %v717 = vrot.slane %v715, 3
          %v719 = vsel %vm257, %v717, 0.0
          %v720 = vmul.f32 %v719, %v318
          %v721 = vadd.f32 %v711, %v720
          %v722 = vrot.slane %v715, 1
          %v724 = vsel %vm618, %v722, 0.0
          %v725 = vmul.f32 %v724, %v332
          %v726 = vadd.f32 %v721, %v725
          %v727 = vadd.f32 %v726, %v341
          %s728 = scalar_lea.vmem %s238, %s685 [#allocation7]
          %729 = vst [vmem:[%s728] sm:$0xf] %v727
        $region59: #{tpu_custom_call.1} parent=31 // loop_footer
          %s662 = sadd.s32 1, %s658
        $region60: #{tpu_custom_call.1} parent=31 // loop_footer_branch
          %657 = sbr.rel target = $region56
        $region61: #{tpu_custom_call.1} parent=31 // loop_exit
          _
        %v730 = vld [vmem:[%s209 + $0x148] sm:$0xf]
        %v731 = vmul.f32 %v730, %v459
        %v732 = vrot.slane %v730, 4
        %v733 = vsel %vm621, %v732, %v730
        %v734 = vrot.slane %v733, 4
        %v735 = vsel %vm621, %v734, %v730
        %v737 = vrot.slane %v735, 3
        %v739 = vsel %vm257, %v737, 0.0
        %v740 = vmul.f32 %v739, %v471
        %v741 = vadd.f32 %v731, %v740
        %v742 = vrot.slane %v735, 1
        %v744 = vsel %vm618, %v742, 0.0
        %v745 = vmul.f32 %v744, %v485
        %v746 = vadd.f32 %v741, %v745
        %v747 = vld [vmem:[%s209 + $0x14c] sm:$0xf]
        %v748 = vmul.f32 %v747, %v266
        %v749 = vadd.f32 %v746, %v748
        %v750 = vrot.slane %v747, 4
        %v751 = vsel %vm621, %v750, %v747
        %v752 = vrot.slane %v751, 4
        %v753 = vsel %vm621, %v752, %v747
        %v755 = vrot.slane %v753, 3
        %v757 = vsel %vm257, %v755, 0.0
        %v758 = vmul.f32 %v757, %v279
        %v759 = vadd.f32 %v749, %v758
        %v760 = vrot.slane %v753, 1
        %v762 = vsel %vm618, %v760, 0.0
        %v763 = vmul.f32 %v762, %v294
        %v764 = vadd.f32 %v759, %v763
        %v765 = vadd.f32 %v764, %v341
        %766 = vst [vmem:[%s238 + $0x14c] sm:$0xf] %v765
        %s767 = sand.u32 %s123, 1
        %s768 = scalar_lea.sflag [#allocation4], %s767
        %s769 = sand.u32 %s123, 1
        %s770 = smul.addr %s769, 336
        %s771 = scalar_lea.vmem [#allocation7], %s770
        // Predicated region
        $region62: #{tpu_custom_call.1} parent=31 // pred_check
          %p772 = pneg %p133
        $region63: #{tpu_custom_call.1} parent=31 // pred_check_branch
          %774 = sbr.rel (%p772) target = $region65
        $region64: #{tpu_custom_call.1} parent=31 // pred_region
          %s776 = ssub.s32 5376, 5376
          %777 = vsyncadd %s768, %s776
          %s778 = smul.addr %s25, 42
          %s779 = sadd.s32 %s26, %s778
          %s780 = smul.addr %s779, 128
          %s781 = scalar_lea.hbm %s3, %s780
          %s782 = sshll.u32 %s771, 4
          %s783 = int_to_ptr.vmem [resolvable:$true] %s782
          %788 = dma.vmem_to_hbm [thread:$0]  %s783, 5376, %s781, %s768, 128, 128, 8
        $region65: #{tpu_custom_call.1} parent=31 // pred_fallthru
          _
      $region32: #{tpu_custom_call.1} parent=5 // pred_fallthru
        _
      %p789 = scmp.le.s32.totalorder 2, %s16
      // Predicated region
      $region66: #{tpu_custom_call.1} parent=5 // pred_check
        %p790 = pneg %p789
      $region67: #{tpu_custom_call.1} parent=5 // pred_check_branch
        %792 = sbr.rel (%p790) target = $region69
      $region68: #{tpu_custom_call.1} parent=5 // pred_region
        %s793 = ssub.s32 %s16, 2
        // Predicated region
        $region70: #{tpu_custom_call.1} parent=68 // pred_check
          %p794 = pneg %p139
        $region71: #{tpu_custom_call.1} parent=68 // pred_check_branch
          %796 = sbr.rel (%p794) target = $region73
        $region72: #{tpu_custom_call.1} parent=68 // pred_region
          %s797 = sand.u32 %s124, 1
          %s798 = scalar_lea.sflag [#allocation4], %s797
          %s799 = sand.u32 %s124, 1
          %s800 = smul.addr %s799, 336
          %s801 = scalar_lea.vmem [#allocation7], %s800
          %802 = dma.done %s798, 5376
        $region73: #{tpu_custom_call.1} parent=68 // pred_fallthru
          _
      $region69: #{tpu_custom_call.1} parent=5 // pred_fallthru
        _
    $region6: #{tpu_custom_call.1} parent=1 // loop_footer
      %s20 = sadd.s32 1, %s16
    $region7: #{tpu_custom_call.1} parent=1 // loop_footer_branch
      %15 = sbr.rel target = $region3
    $region8: #{tpu_custom_call.1} parent=1 // loop_exit
      _
    %803 = vsyncpa [#allocation3], 1
    %s804 = scalar_lea.sflag [#allocation3], 1
    %805 = vsyncpa %s804, 1
    %806 = vsyncpa [#allocation6], 1
    %807 = vsyncpa [#allocation4], 1
    %s808 = scalar_lea.sflag [#allocation4], 1
    %809 = vsyncpa %s808, 1

</llo_original>
